<compile_context>
chip_gen: v6e
topology: v6e:2x2x1
jax: 0.10.0
libtpu: 0.0.40
codegen_flags: <defaults>
</compile_context>

<pallas_src>
import functools

import jax
import jax.numpy as jnp
from jax.experimental import pallas as pl
from jax.experimental.pallas import tpu as pltpu


def _mha_kernel(q_ref, k_ref, v_ref,
                wq_ref, bq_ref, wk_ref, bk_ref, wv_ref, bv_ref,
                wo_ref, bo_ref, bias_ref, o_ref,
                *, num_heads, head_dim, scale, compute_dtype):
    cd = compute_dtype
    _, T, E = o_ref.shape

    xq = q_ref[0].astype(cd)                      # (T, E)
    xk = k_ref[0].astype(cd)                      # (S, E)
    xv = v_ref[0].astype(cd)                      # (S, E)

    # Full-width projections (lane-dense MXU matmuls, f32 accumulation).
    q = jnp.dot(xq, wq_ref[...].astype(cd),
                preferred_element_type=jnp.float32) + bq_ref[...]
    k = jnp.dot(xk, wk_ref[...].astype(cd),
                preferred_element_type=jnp.float32) + bk_ref[...]
    v = jnp.dot(xv, wv_ref[...].astype(cd),
                preferred_element_type=jnp.float32) + bv_ref[...]

    # Fold the per-head scale once into Q (T x E VPU mul), not per score tile.
    q = q * scale

    bias = bias_ref[0]                            # (H, T, S) f32

    # Per-head attention, unrolled (num_heads is small & static). Static lane
    # slices of width head_dim keep everything in vregs.
    ctx_heads = []
    for h in range(num_heads):
        lo = h * head_dim
        q_h = q[:, lo:lo + head_dim].astype(cd)   # (T, D)
        k_h = k[:, lo:lo + head_dim].astype(cd)   # (S, D)
        v_h = v[:, lo:lo + head_dim].astype(cd)   # (S, D)

        s = jnp.einsum('td,sd->ts', q_h, k_h,
                       preferred_element_type=jnp.float32)
        s = s + bias[h]                           # (T, S)

        # Numerically stable softmax over keys (f32 on the VPU/EUP).
        m = jnp.max(s, axis=-1, keepdims=True)
        p = jnp.exp(s - m)
        p = p / jnp.sum(p, axis=-1, keepdims=True)
        # TODO(synk): attn_dropout is identity here (inference/eval semantics);
        # train-mode dropout RNG not implemented.

        ctx_heads.append(jnp.dot(p.astype(cd), v_h,
                                 preferred_element_type=jnp.float32))  # (T, D)

    # Concatenate heads back to a lane-dense (T, E) tile, then a single
    # K=128 output-projection matmul on the MXU.
    ctx = jnp.concatenate(ctx_heads, axis=-1).astype(cd)               # (T, E)
    out = jnp.dot(ctx, wo_ref[...].astype(cd),
                  preferred_element_type=jnp.float32) + bo_ref[...]    # (T, E)

    o_ref[0] = out.astype(o_ref.dtype)


def graphormer_mha_forward(query, key, value, params, *, num_heads,
                           spatial_bias=None, directional_bias=None,
                           key_padding_mask=None, attn_mask=None,
                           compute_dtype=jnp.float32):
    """query: (B,T,E), key/value: (B,S,E). Returns (output, None) like the module."""
    wq, bq = params["wq"], params["bq"]
    wk, bk = params["wk"], params["bk"]
    wv, bv = params["wv"], params["bv"]
    wo, bo = params["wo"], params["bo"]

    B, T, E = query.shape
    _, S, _ = key.shape
    H = num_heads
    D = E // H
    assert D * H == E, "embed_dim must be divisible by num_heads"
    scale = float(D) ** -0.5

    # Fold all additive / masking score adjustments into one (B,H,T,S) bias.
    bias = jnp.zeros((B, H, T, S), jnp.float32)
    if attn_mask is not None:
        am = attn_mask.astype(jnp.float32)
        if am.ndim == 2:
            am = am[None, None, :, :]
        elif am.ndim == 3:
            am = am[:, None, :, :]
        bias = bias + am
    if key_padding_mask is not None:
        neg = jnp.asarray(jnp.finfo(jnp.float32).min, jnp.float32)
        bias = bias + jnp.where(key_padding_mask[:, None, None, :], neg, 0.0)
    if T == S:
        if spatial_bias is not None:
            bias = bias + spatial_bias.astype(jnp.float32)
        if directional_bias is not None:
            bias = bias + directional_bias.astype(jnp.float32)

    kernel = functools.partial(_mha_kernel, num_heads=H, head_dim=D,
                               scale=scale, compute_dtype=compute_dtype)

    out = pl.pallas_call(
        kernel,
        out_shape=jax.ShapeDtypeStruct((B, T, E), query.dtype),
        grid_spec=pltpu.PrefetchScalarGridSpec(
            num_scalar_prefetch=0,
            grid=(B,),
            in_specs=[
                pl.BlockSpec((1, T, E), lambda b: (b, 0, 0)),       # query
                pl.BlockSpec((1, S, E), lambda b: (b, 0, 0)),       # key
                pl.BlockSpec((1, S, E), lambda b: (b, 0, 0)),       # value
                pl.BlockSpec((E, E), lambda b: (0, 0)),             # Wq (resident)
                pl.BlockSpec((1, E), lambda b: (0, 0)),             # bq
                pl.BlockSpec((E, E), lambda b: (0, 0)),             # Wk
                pl.BlockSpec((1, E), lambda b: (0, 0)),             # bk
                pl.BlockSpec((E, E), lambda b: (0, 0)),             # Wv
                pl.BlockSpec((1, E), lambda b: (0, 0)),             # bv
                pl.BlockSpec((E, E), lambda b: (0, 0)),             # Wo
                pl.BlockSpec((1, E), lambda b: (0, 0)),             # bo
                pl.BlockSpec((1, H, T, S), lambda b: (b, 0, 0, 0)), # combined bias
            ],
            out_specs=pl.BlockSpec((1, T, E), lambda b: (b, 0, 0)),
        ),
        compiler_params=pltpu.CompilerParams(
            dimension_semantics=("parallel",)),
    )(query, key, value,
      wq, bq.reshape(1, E), wk, bk.reshape(1, E),
      wv, bv.reshape(1, E), wo, bo.reshape(1, E), bias)

    return out, None


def graphormer_mha_reference(query, key, value, params, *, num_heads,
                             spatial_bias=None, directional_bias=None,
                             key_padding_mask=None, attn_mask=None):
    """Pure-JAX mirror of the PyTorch forward (eval mode)."""
    wq, bq = params["wq"], params["bq"]
    wk, bk = params["wk"], params["bk"]
    wv, bv = params["wv"], params["bv"]
    wo, bo = params["wo"], params["bo"]
    B, T, E = query.shape
    _, S, _ = key.shape
    H = num_heads
    D = E // H
    scale = float(D) ** -0.5

    q = (query @ wq + bq).reshape(B, T, H, D).transpose(0, 2, 1, 3)
    k = (key @ wk + bk).reshape(B, S, H, D).transpose(0, 2, 1, 3)
    v = (value @ wv + bv).reshape(B, S, H, D).transpose(0, 2, 1, 3)

    s = jnp.einsum('bhtd,bhsd->bhts', q, k) * scale
    if attn_mask is not None:
        am = attn_mask
        if am.ndim == 2:
            am = am[None, None, :, :]
        elif am.ndim == 3:
            am = am[:, None, :, :]
        s = s + am
    if key_padding_mask is not None:
        s = jnp.where(key_padding_mask[:, None, None, :],
                      jnp.finfo(jnp.float32).min, s)
    if T == S:
        if spatial_bias is not None:
            s = s + spatial_bias
        if directional_bias is not None:
            s = s + directional_bias
    p = jax.nn.softmax(s, axis=-1)
    ctx = jnp.einsum('bhts,bhsd->bhtd', p, v)
    ctx = ctx.transpose(0, 2, 1, 3).reshape(B, T, E)
    return ctx @ wo + bo


if __name__ == "__main__":
    # Small shapes consistent with the module: embed_dim=128, 4 heads
    # (head_dim=32), batch=2, seq=8 (self-attention, T == S).
    B, T, S, E, H = 2, 8, 8, 128, 4

    root = jax.random.PRNGKey(0)
    keys = jax.random.split(root, 13)

    query = jax.random.normal(keys[0], (B, T, E), jnp.float32)
    key_in = jax.random.normal(keys[1], (B, S, E), jnp.float32)
    value = jax.random.normal(keys[2], (B, S, E), jnp.float32)

    bound = 1.0 / (E ** 0.5)

    def make_linear(kw, kb):
        w = jax.random.uniform(kw, (E, E), jnp.float32, -bound, bound)
        b = jax.random.uniform(kb, (E,), jnp.float32, -bound, bound)
        return w, b

    wq, bq = make_linear(keys[3], keys[4])
    wk, bk = make_linear(keys[5], keys[6])
    wv, bv = make_linear(keys[7], keys[8])
    wo, bo = make_linear(keys[9], keys[10])
    params = dict(wq=wq, bq=bq, wk=wk, bk=bk, wv=wv, bv=bv, wo=wo, bo=bo)

    spatial_bias = 0.1 * jax.random.normal(keys[11], (B, H, T, S), jnp.float32)
    directional_bias = 0.05 * jax.random.normal(keys[12], (B, H, T, S),
                                                jnp.float32)

    out, _ = graphormer_mha_forward(
        query, key_in, value, params, num_heads=H,
        spatial_bias=spatial_bias, directional_bias=directional_bias)
    out = jax.block_until_ready(out)

    ref = graphormer_mha_reference(
        query, key_in, value, params, num_heads=H,
        spatial_bias=spatial_bias, directional_bias=directional_bias)

    assert out.shape == (B, T, E)
    assert jnp.allclose(out, ref, atol=1e-4, rtol=1e-4), "mismatch vs reference"

    print("KERNEL_OK")
</pallas_src>

<mosaic_0001>
module attributes {stable_mosaic.version = 11 : i64} {
  func.func @_mha_kernel(%arg0: i32, %arg1: memref<1x8x128xf32, #tpu.memory_space<vmem>>, %arg2: memref<1x8x128xf32, #tpu.memory_space<vmem>>, %arg3: memref<1x8x128xf32, #tpu.memory_space<vmem>>, %arg4: memref<128x128xf32, #tpu.memory_space<vmem>>, %arg5: memref<1x128xf32, #tpu.memory_space<vmem>>, %arg6: memref<128x128xf32, #tpu.memory_space<vmem>>, %arg7: memref<1x128xf32, #tpu.memory_space<vmem>>, %arg8: memref<128x128xf32, #tpu.memory_space<vmem>>, %arg9: memref<1x128xf32, #tpu.memory_space<vmem>>, %arg10: memref<128x128xf32, #tpu.memory_space<vmem>>, %arg11: memref<1x128xf32, #tpu.memory_space<vmem>>, %arg12: memref<1x4x8x8xf32, #tpu.memory_space<vmem>>, %arg13: memref<1x8x128xf32, #tpu.memory_space<vmem>>) attributes {dimension_semantics = [#tpu.dimension_semantics<parallel>], iteration_bounds = array<i64: 2>, scalar_prefetch = 0 : i64, scratch_operands = 0 : i64, tpu.core_type = #tpu.core_type<tc>, window_params = [{transform_indices = @transform_0, window_bounds = array<i64: 1, 8, 128>}, {transform_indices = @transform_1, window_bounds = array<i64: 1, 8, 128>}, {transform_indices = @transform_2, window_bounds = array<i64: 1, 8, 128>}, {pipeline_mode = #tpu.pipeline_mode<synchronous>, transform_indices = @transform_3, window_bounds = array<i64: 128, 128>}, {pipeline_mode = #tpu.pipeline_mode<synchronous>, transform_indices = @transform_4, window_bounds = array<i64: 1, 128>}, {pipeline_mode = #tpu.pipeline_mode<synchronous>, transform_indices = @transform_5, window_bounds = array<i64: 128, 128>}, {pipeline_mode = #tpu.pipeline_mode<synchronous>, transform_indices = @transform_6, window_bounds = array<i64: 1, 128>}, {pipeline_mode = #tpu.pipeline_mode<synchronous>, transform_indices = @transform_7, window_bounds = array<i64: 128, 128>}, {pipeline_mode = #tpu.pipeline_mode<synchronous>, transform_indices = @transform_8, window_bounds = array<i64: 1, 128>}, {pipeline_mode = #tpu.pipeline_mode<synchronous>, transform_indices = @transform_9, window_bounds = array<i64: 128, 128>}, {pipeline_mode = #tpu.pipeline_mode<synchronous>, transform_indices = @transform_10, window_bounds = array<i64: 1, 128>}, {transform_indices = @transform_11, window_bounds = array<i64: 1, 4, 8, 8>}, {transform_indices = @transform_12, window_bounds = array<i64: 1, 8, 128>}]} {
    %c0 = arith.constant 0 : index
    %c0_0 = arith.constant 0 : index
    %c0_1 = arith.constant 0 : index
    %0 = vector.load %arg1[%c0, %c0_0, %c0_1] : memref<1x8x128xf32, #tpu.memory_space<vmem>>, vector<1x8x128xf32>
    %1 = vector.shape_cast %0 : vector<1x8x128xf32> to vector<8x128xf32>
    %c0_2 = arith.constant 0 : index
    %c0_3 = arith.constant 0 : index
    %c0_4 = arith.constant 0 : index
    %2 = vector.load %arg2[%c0_2, %c0_3, %c0_4] : memref<1x8x128xf32, #tpu.memory_space<vmem>>, vector<1x8x128xf32>
    %3 = vector.shape_cast %2 : vector<1x8x128xf32> to vector<8x128xf32>
    %c0_5 = arith.constant 0 : index
    %c0_6 = arith.constant 0 : index
    %c0_7 = arith.constant 0 : index
    %4 = vector.load %arg3[%c0_5, %c0_6, %c0_7] : memref<1x8x128xf32, #tpu.memory_space<vmem>>, vector<1x8x128xf32>
    %5 = vector.shape_cast %4 : vector<1x8x128xf32> to vector<8x128xf32>
    %c0_8 = arith.constant 0 : index
    %c0_9 = arith.constant 0 : index
    %6 = vector.load %arg4[%c0_8, %c0_9] : memref<128x128xf32, #tpu.memory_space<vmem>>, vector<128x128xf32>
    %cst = arith.constant dense<0.000000e+00> : vector<8x128xf32>
    %7 = tpu.matmul %1, %6, %cst {dimension_numbers = #tpu.dot_dimension_numbers<[1], [0], [0], [1], [0, 0, 1, 1], [], []>} : vector<8x128xf32>, vector<128x128xf32>, vector<8x128xf32> -> vector<8x128xf32>
    %c0_10 = arith.constant 0 : index
    %c0_11 = arith.constant 0 : index
    %8 = vector.load %arg5[%c0_10, %c0_11] : memref<1x128xf32, #tpu.memory_space<vmem>>, vector<1x128xf32>
    %9 = vector.broadcast %8 : vector<1x128xf32> to vector<8x128xf32>
    %10 = arith.addf %7, %9 : vector<8x128xf32>
    %c0_12 = arith.constant 0 : index
    %c0_13 = arith.constant 0 : index
    %11 = vector.load %arg6[%c0_12, %c0_13] : memref<128x128xf32, #tpu.memory_space<vmem>>, vector<128x128xf32>
    %cst_14 = arith.constant dense<0.000000e+00> : vector<8x128xf32>
    %12 = tpu.matmul %3, %11, %cst_14 {dimension_numbers = #tpu.dot_dimension_numbers<[1], [0], [0], [1], [0, 0, 1, 1], [], []>} : vector<8x128xf32>, vector<128x128xf32>, vector<8x128xf32> -> vector<8x128xf32>
    %c0_15 = arith.constant 0 : index
    %c0_16 = arith.constant 0 : index
    %13 = vector.load %arg7[%c0_15, %c0_16] : memref<1x128xf32, #tpu.memory_space<vmem>>, vector<1x128xf32>
    %14 = vector.broadcast %13 : vector<1x128xf32> to vector<8x128xf32>
    %15 = arith.addf %12, %14 : vector<8x128xf32>
    %c0_17 = arith.constant 0 : index
    %c0_18 = arith.constant 0 : index
    %16 = vector.load %arg8[%c0_17, %c0_18] : memref<128x128xf32, #tpu.memory_space<vmem>>, vector<128x128xf32>
    %cst_19 = arith.constant dense<0.000000e+00> : vector<8x128xf32>
    %17 = tpu.matmul %5, %16, %cst_19 {dimension_numbers = #tpu.dot_dimension_numbers<[1], [0], [0], [1], [0, 0, 1, 1], [], []>} : vector<8x128xf32>, vector<128x128xf32>, vector<8x128xf32> -> vector<8x128xf32>
    %c0_20 = arith.constant 0 : index
    %c0_21 = arith.constant 0 : index
    %18 = vector.load %arg9[%c0_20, %c0_21] : memref<1x128xf32, #tpu.memory_space<vmem>>, vector<1x128xf32>
    %19 = vector.broadcast %18 : vector<1x128xf32> to vector<8x128xf32>
    %20 = arith.addf %17, %19 : vector<8x128xf32>
    %cst_22 = arith.constant 0.176776692 : f32
    %21 = vector.broadcast %cst_22 : f32 to vector<8x128xf32>
    %22 = arith.mulf %10, %21 : vector<8x128xf32>
    %c0_23 = arith.constant 0 : index
    %c0_24 = arith.constant 0 : index
    %c0_25 = arith.constant 0 : index
    %c0_26 = arith.constant 0 : index
    %23 = vector.load %arg12[%c0_23, %c0_24, %c0_25, %c0_26] : memref<1x4x8x8xf32, #tpu.memory_space<vmem>>, vector<1x4x8x8xf32>
    %24 = vector.shape_cast %23 : vector<1x4x8x8xf32> to vector<4x8x8xf32>
    %25 = vector.extract_strided_slice %22 {offsets = [0, 0], sizes = [8, 32], strides = [1, 1]} : vector<8x128xf32> to vector<8x32xf32>
    %26 = vector.extract_strided_slice %15 {offsets = [0, 0], sizes = [8, 32], strides = [1, 1]} : vector<8x128xf32> to vector<8x32xf32>
    %27 = vector.extract_strided_slice %20 {offsets = [0, 0], sizes = [8, 32], strides = [1, 1]} : vector<8x128xf32> to vector<8x32xf32>
    "tpu.trace_start"() <{level = 10 : i32, message = "td,sd->ts"}> : () -> ()
    %cst_27 = arith.constant dense<0.000000e+00> : vector<8x8xf32>
    %28 = tpu.matmul %25, %26, %cst_27 {dimension_numbers = #tpu.dot_dimension_numbers<[1], [1], [0], [0], [0, 0, 1, 0], [], []>} : vector<8x32xf32>, vector<8x32xf32>, vector<8x8xf32> -> vector<8x8xf32>
    "tpu.trace_stop"() : () -> ()
    %29 = vector.extract_strided_slice %24 {offsets = [0, 0, 0], sizes = [1, 8, 8], strides = [1, 1, 1]} : vector<4x8x8xf32> to vector<1x8x8xf32>
    %30 = vector.shape_cast %29 : vector<1x8x8xf32> to vector<8x8xf32>
    %31 = arith.addf %28, %30 : vector<8x8xf32>
    %cst_28 = arith.constant dense<0xFF800000> : vector<8xf32>
    %32 = vector.multi_reduction <maximumf>, %31, %cst_28 [1] : vector<8x8xf32> to vector<8xf32>
    %33 = vector.shape_cast %32 : vector<8xf32> to vector<8x1xf32>
    %34 = vector.broadcast %33 : vector<8x1xf32> to vector<8x8xf32>
    %35 = arith.subf %31, %34 : vector<8x8xf32>
    %36 = math.exp %35 : vector<8x8xf32>
    %cst_29 = arith.constant dense<0.000000e+00> : vector<8xf32>
    %37 = vector.multi_reduction <add>, %36, %cst_29 [1] : vector<8x8xf32> to vector<8xf32>
    %38 = vector.shape_cast %37 : vector<8xf32> to vector<8x1xf32>
    %39 = vector.broadcast %38 : vector<8x1xf32> to vector<8x8xf32>
    %40 = arith.divf %36, %39 : vector<8x8xf32>
    %cst_30 = arith.constant dense<0.000000e+00> : vector<8x32xf32>
    %41 = tpu.matmul %40, %27, %cst_30 {dimension_numbers = #tpu.dot_dimension_numbers<[1], [0], [0], [1], [0, 0, 1, 1], [], []>} : vector<8x8xf32>, vector<8x32xf32>, vector<8x32xf32> -> vector<8x32xf32>
    %42 = vector.extract_strided_slice %22 {offsets = [0, 32], sizes = [8, 32], strides = [1, 1]} : vector<8x128xf32> to vector<8x32xf32>
    %43 = vector.extract_strided_slice %15 {offsets = [0, 32], sizes = [8, 32], strides = [1, 1]} : vector<8x128xf32> to vector<8x32xf32>
    %44 = vector.extract_strided_slice %20 {offsets = [0, 32], sizes = [8, 32], strides = [1, 1]} : vector<8x128xf32> to vector<8x32xf32>
    "tpu.trace_start"() <{level = 10 : i32, message = "td,sd->ts"}> : () -> ()
    %cst_31 = arith.constant dense<0.000000e+00> : vector<8x8xf32>
    %45 = tpu.matmul %42, %43, %cst_31 {dimension_numbers = #tpu.dot_dimension_numbers<[1], [1], [0], [0], [0, 0, 1, 0], [], []>} : vector<8x32xf32>, vector<8x32xf32>, vector<8x8xf32> -> vector<8x8xf32>
    "tpu.trace_stop"() : () -> ()
    %46 = vector.extract_strided_slice %24 {offsets = [1, 0, 0], sizes = [1, 8, 8], strides = [1, 1, 1]} : vector<4x8x8xf32> to vector<1x8x8xf32>
    %47 = vector.shape_cast %46 : vector<1x8x8xf32> to vector<8x8xf32>
    %48 = arith.addf %45, %47 : vector<8x8xf32>
    %cst_32 = arith.constant dense<0xFF800000> : vector<8xf32>
    %49 = vector.multi_reduction <maximumf>, %48, %cst_32 [1] : vector<8x8xf32> to vector<8xf32>
    %50 = vector.shape_cast %49 : vector<8xf32> to vector<8x1xf32>
    %51 = vector.broadcast %50 : vector<8x1xf32> to vector<8x8xf32>
    %52 = arith.subf %48, %51 : vector<8x8xf32>
    %53 = math.exp %52 : vector<8x8xf32>
    %cst_33 = arith.constant dense<0.000000e+00> : vector<8xf32>
    %54 = vector.multi_reduction <add>, %53, %cst_33 [1] : vector<8x8xf32> to vector<8xf32>
    %55 = vector.shape_cast %54 : vector<8xf32> to vector<8x1xf32>
    %56 = vector.broadcast %55 : vector<8x1xf32> to vector<8x8xf32>
    %57 = arith.divf %53, %56 : vector<8x8xf32>
    %cst_34 = arith.constant dense<0.000000e+00> : vector<8x32xf32>
    %58 = tpu.matmul %57, %44, %cst_34 {dimension_numbers = #tpu.dot_dimension_numbers<[1], [0], [0], [1], [0, 0, 1, 1], [], []>} : vector<8x8xf32>, vector<8x32xf32>, vector<8x32xf32> -> vector<8x32xf32>
    %59 = vector.extract_strided_slice %22 {offsets = [0, 64], sizes = [8, 32], strides = [1, 1]} : vector<8x128xf32> to vector<8x32xf32>
    %60 = vector.extract_strided_slice %15 {offsets = [0, 64], sizes = [8, 32], strides = [1, 1]} : vector<8x128xf32> to vector<8x32xf32>
    %61 = vector.extract_strided_slice %20 {offsets = [0, 64], sizes = [8, 32], strides = [1, 1]} : vector<8x128xf32> to vector<8x32xf32>
    "tpu.trace_start"() <{level = 10 : i32, message = "td,sd->ts"}> : () -> ()
    %cst_35 = arith.constant dense<0.000000e+00> : vector<8x8xf32>
    %62 = tpu.matmul %59, %60, %cst_35 {dimension_numbers = #tpu.dot_dimension_numbers<[1], [1], [0], [0], [0, 0, 1, 0], [], []>} : vector<8x32xf32>, vector<8x32xf32>, vector<8x8xf32> -> vector<8x8xf32>
    "tpu.trace_stop"() : () -> ()
    %63 = vector.extract_strided_slice %24 {offsets = [2, 0, 0], sizes = [1, 8, 8], strides = [1, 1, 1]} : vector<4x8x8xf32> to vector<1x8x8xf32>
    %64 = vector.shape_cast %63 : vector<1x8x8xf32> to vector<8x8xf32>
    %65 = arith.addf %62, %64 : vector<8x8xf32>
    %cst_36 = arith.constant dense<0xFF800000> : vector<8xf32>
    %66 = vector.multi_reduction <maximumf>, %65, %cst_36 [1] : vector<8x8xf32> to vector<8xf32>
    %67 = vector.shape_cast %66 : vector<8xf32> to vector<8x1xf32>
    %68 = vector.broadcast %67 : vector<8x1xf32> to vector<8x8xf32>
    %69 = arith.subf %65, %68 : vector<8x8xf32>
    %70 = math.exp %69 : vector<8x8xf32>
    %cst_37 = arith.constant dense<0.000000e+00> : vector<8xf32>
    %71 = vector.multi_reduction <add>, %70, %cst_37 [1] : vector<8x8xf32> to vector<8xf32>
    %72 = vector.shape_cast %71 : vector<8xf32> to vector<8x1xf32>
    %73 = vector.broadcast %72 : vector<8x1xf32> to vector<8x8xf32>
    %74 = arith.divf %70, %73 : vector<8x8xf32>
    %cst_38 = arith.constant dense<0.000000e+00> : vector<8x32xf32>
    %75 = tpu.matmul %74, %61, %cst_38 {dimension_numbers = #tpu.dot_dimension_numbers<[1], [0], [0], [1], [0, 0, 1, 1], [], []>} : vector<8x8xf32>, vector<8x32xf32>, vector<8x32xf32> -> vector<8x32xf32>
    %76 = vector.extract_strided_slice %22 {offsets = [0, 96], sizes = [8, 32], strides = [1, 1]} : vector<8x128xf32> to vector<8x32xf32>
    %77 = vector.extract_strided_slice %15 {offsets = [0, 96], sizes = [8, 32], strides = [1, 1]} : vector<8x128xf32> to vector<8x32xf32>
    %78 = vector.extract_strided_slice %20 {offsets = [0, 96], sizes = [8, 32], strides = [1, 1]} : vector<8x128xf32> to vector<8x32xf32>
    "tpu.trace_start"() <{level = 10 : i32, message = "td,sd->ts"}> : () -> ()
    %cst_39 = arith.constant dense<0.000000e+00> : vector<8x8xf32>
    %79 = tpu.matmul %76, %77, %cst_39 {dimension_numbers = #tpu.dot_dimension_numbers<[1], [1], [0], [0], [0, 0, 1, 0], [], []>} : vector<8x32xf32>, vector<8x32xf32>, vector<8x8xf32> -> vector<8x8xf32>
    "tpu.trace_stop"() : () -> ()
    %80 = vector.extract_strided_slice %24 {offsets = [3, 0, 0], sizes = [1, 8, 8], strides = [1, 1, 1]} : vector<4x8x8xf32> to vector<1x8x8xf32>
    %81 = vector.shape_cast %80 : vector<1x8x8xf32> to vector<8x8xf32>
    %82 = arith.addf %79, %81 : vector<8x8xf32>
    %cst_40 = arith.constant dense<0xFF800000> : vector<8xf32>
    %83 = vector.multi_reduction <maximumf>, %82, %cst_40 [1] : vector<8x8xf32> to vector<8xf32>
    %84 = vector.shape_cast %83 : vector<8xf32> to vector<8x1xf32>
    %85 = vector.broadcast %84 : vector<8x1xf32> to vector<8x8xf32>
    %86 = arith.subf %82, %85 : vector<8x8xf32>
    %87 = math.exp %86 : vector<8x8xf32>
    %cst_41 = arith.constant dense<0.000000e+00> : vector<8xf32>
    %88 = vector.multi_reduction <add>, %87, %cst_41 [1] : vector<8x8xf32> to vector<8xf32>
    %89 = vector.shape_cast %88 : vector<8xf32> to vector<8x1xf32>
    %90 = vector.broadcast %89 : vector<8x1xf32> to vector<8x8xf32>
    %91 = arith.divf %87, %90 : vector<8x8xf32>
    %cst_42 = arith.constant dense<0.000000e+00> : vector<8x32xf32>
    %92 = tpu.matmul %91, %78, %cst_42 {dimension_numbers = #tpu.dot_dimension_numbers<[1], [0], [0], [1], [0, 0, 1, 1], [], []>} : vector<8x8xf32>, vector<8x32xf32>, vector<8x32xf32> -> vector<8x32xf32>
    %93 = tpu.concatenate %41, %58, %75, %92 in 1 : vector<8x32xf32>, vector<8x32xf32>, vector<8x32xf32>, vector<8x32xf32> -> vector<8x128xf32>
    %c0_43 = arith.constant 0 : index
    %c0_44 = arith.constant 0 : index
    %94 = vector.load %arg10[%c0_43, %c0_44] : memref<128x128xf32, #tpu.memory_space<vmem>>, vector<128x128xf32>
    %cst_45 = arith.constant dense<0.000000e+00> : vector<8x128xf32>
    %95 = tpu.matmul %93, %94, %cst_45 {dimension_numbers = #tpu.dot_dimension_numbers<[1], [0], [0], [1], [0, 0, 1, 1], [], []>} : vector<8x128xf32>, vector<128x128xf32>, vector<8x128xf32> -> vector<8x128xf32>
    %c0_46 = arith.constant 0 : index
    %c0_47 = arith.constant 0 : index
    %96 = vector.load %arg11[%c0_46, %c0_47] : memref<1x128xf32, #tpu.memory_space<vmem>>, vector<1x128xf32>
    %97 = vector.broadcast %96 : vector<1x128xf32> to vector<8x128xf32>
    %98 = arith.addf %95, %97 : vector<8x128xf32>
    %c0_48 = arith.constant 0 : index
    %c0_49 = arith.constant 0 : index
    %c0_50 = arith.constant 0 : index
    %99 = vector.load %arg13[%c0_48, %c0_49, %c0_50] : memref<1x8x128xf32, #tpu.memory_space<vmem>>, vector<1x8x128xf32>
    %100 = vector.shape_cast %99 : vector<1x8x128xf32> to vector<8x128xf32>
    %101 = vector.shape_cast %98 : vector<8x128xf32> to vector<1x8x128xf32>
    tpu.vector_store %arg13[%c0_48, %c0_49, %c0_50], %101 {strides = array<i32>} : memref<1x8x128xf32, #tpu.memory_space<vmem>>, vector<1x8x128xf32>,
    return
  }
  func.func @transform_0(%arg0: i32) -> (i32, i32, i32) {
    %c0_i32 = arith.constant 0 : i32
    %c0_i32_0 = arith.constant 0 : i32
    %c0_i32_1 = arith.constant 0 : i32
    return %arg0, %c0_i32, %c0_i32_0 : i32, i32, i32
  }
  func.func @transform_1(%arg0: i32) -> (i32, i32, i32) {
    %c0_i32 = arith.constant 0 : i32
    %c0_i32_0 = arith.constant 0 : i32
    %c0_i32_1 = arith.constant 0 : i32
    return %arg0, %c0_i32, %c0_i32_0 : i32, i32, i32
  }
  func.func @transform_2(%arg0: i32) -> (i32, i32, i32) {
    %c0_i32 = arith.constant 0 : i32
    %c0_i32_0 = arith.constant 0 : i32
    %c0_i32_1 = arith.constant 0 : i32
    return %arg0, %c0_i32, %c0_i32_0 : i32, i32, i32
  }
  func.func @transform_3(%arg0: i32) -> (i32, i32) {
    %c0_i32 = arith.constant 0 : i32
    %c0_i32_0 = arith.constant 0 : i32
    %c0_i32_1 = arith.constant 0 : i32
    return %c0_i32, %c0_i32_0 : i32, i32
  }
  func.func @transform_4(%arg0: i32) -> (i32, i32) {
    %c0_i32 = arith.constant 0 : i32
    %c0_i32_0 = arith.constant 0 : i32
    %c0_i32_1 = arith.constant 0 : i32
    return %c0_i32, %c0_i32_0 : i32, i32
  }
  func.func @transform_5(%arg0: i32) -> (i32, i32) {
    %c0_i32 = arith.constant 0 : i32
    %c0_i32_0 = arith.constant 0 : i32
    %c0_i32_1 = arith.constant 0 : i32
    return %c0_i32, %c0_i32_0 : i32, i32
  }
  func.func @transform_6(%arg0: i32) -> (i32, i32) {
    %c0_i32 = arith.constant 0 : i32
    %c0_i32_0 = arith.constant 0 : i32
    %c0_i32_1 = arith.constant 0 : i32
    return %c0_i32, %c0_i32_0 : i32, i32
  }
  func.func @transform_7(%arg0: i32) -> (i32, i32) {
    %c0_i32 = arith.constant 0 : i32
    %c0_i32_0 = arith.constant 0 : i32
    %c0_i32_1 = arith.constant 0 : i32
    return %c0_i32, %c0_i32_0 : i32, i32
  }
  func.func @transform_8(%arg0: i32) -> (i32, i32) {
    %c0_i32 = arith.constant 0 : i32
    %c0_i32_0 = arith.constant 0 : i32
    %c0_i32_1 = arith.constant 0 : i32
    return %c0_i32, %c0_i32_0 : i32, i32
  }
  func.func @transform_9(%arg0: i32) -> (i32, i32) {
    %c0_i32 = arith.constant 0 : i32
    %c0_i32_0 = arith.constant 0 : i32
    %c0_i32_1 = arith.constant 0 : i32
    return %c0_i32, %c0_i32_0 : i32, i32
  }
  func.func @transform_10(%arg0: i32) -> (i32, i32) {
    %c0_i32 = arith.constant 0 : i32
    %c0_i32_0 = arith.constant 0 : i32
    %c0_i32_1 = arith.constant 0 : i32
    return %c0_i32, %c0_i32_0 : i32, i32
  }
  func.func @transform_11(%arg0: i32) -> (i32, i32, i32, i32) {
    %c0_i32 = arith.constant 0 : i32
    %c0_i32_0 = arith.constant 0 : i32
    %c0_i32_1 = arith.constant 0 : i32
    %c0_i32_2 = arith.constant 0 : i32
    return %arg0, %c0_i32, %c0_i32_0, %c0_i32_1 : i32, i32, i32, i32
  }
  func.func @transform_12(%arg0: i32) -> (i32, i32, i32) {
    %c0_i32 = arith.constant 0 : i32
    %c0_i32_0 = arith.constant 0 : i32
    %c0_i32_1 = arith.constant 0 : i32
    return %arg0, %c0_i32, %c0_i32_0 : i32, i32, i32
  }
}

</mosaic_0001>

<llo_original>
// kernel: tpu_custom_call.1
$region0: #{tpu_custom_call.1}
  #allocation0 [shape = 'u32[]', space=smem, size = 0x4, offset = 0x4, fixed_abs, tag = 'smem constant byte address 0x4 - core index']
  #allocation1 [shape = 'u32[144,128]{1,0:T(1,128)}', space=vmem, size = 0x12000, scoped, tag = 'internal scratch']
  %s0 = inlined_call_operand.hbm [shape: f32[2,8,128], index: 0, kind: input, shape index: {}]
  %s1 = inlined_call_operand.hbm [shape: f32[2,8,128], index: 1, kind: input, shape index: {}]
  %s2 = inlined_call_operand.hbm [shape: f32[2,8,128], index: 2, kind: input, shape index: {}]
  %s3 = inlined_call_operand.hbm [shape: f32[128,128], index: 3, kind: input, shape index: {}]
  %s4 = inlined_call_operand.vmem [shape: f32[1,128], index: 4, kind: input, shape index: {}]
  %s5 = inlined_call_operand.hbm [shape: f32[128,128], index: 5, kind: input, shape index: {}]
  %s6 = inlined_call_operand.vmem [shape: f32[1,128], index: 6, kind: input, shape index: {}]
  %s7 = inlined_call_operand.hbm [shape: f32[128,128], index: 7, kind: input, shape index: {}]
  %s8 = inlined_call_operand.vmem [shape: f32[1,128], index: 8, kind: input, shape index: {}]
  %s9 = inlined_call_operand.hbm [shape: f32[128,128], index: 9, kind: input, shape index: {}]
  %s10 = inlined_call_operand.vmem [shape: f32[1,128], index: 10, kind: input, shape index: {}]
  %s11 = inlined_call_operand.hbm [shape: f32[2,4,8,8], index: 11, kind: input, shape index: {}]
  %s12 = inlined_call_operand.hbm [shape: f32[2,8,128], index: 12, kind: output, shape index: {}]
  %s13 = sld [smem:[#allocation0]]
  $region113: #{tpu_custom_call.1} parent=0
    _
  %s15 = ssub.s32 1, %s13
  %s16 = scalar_select 0, %s15, %s13
  $region1: #{tpu_custom_call.1} parent=0
    #allocation2 [shape = 'u8[8192]{0}', space=vmem, size = 0x2000, scoped, tag = 'input window, operand 0']
    #allocation3 [shape = 's32[2]{0}', space=sflag, size = 0x8, scoped, tag = 'scoped memory for tpu_custom_call.1']
    #allocation4 [shape = 's32[2]{0}', space=sflag, size = 0x8, scoped, tag = 'scoped memory for tpu_custom_call.1']
    #allocation5 [shape = 'u8[8192]{0}', space=vmem, size = 0x2000, scoped, tag = 'input window, operand 1']
    #allocation6 [shape = 's32[2]{0}', space=sflag, size = 0x8, scoped, tag = 'scoped memory for tpu_custom_call.1']
    #allocation7 [shape = 'u8[8192]{0}', space=vmem, size = 0x2000, scoped, tag = 'input window, operand 2']
    #allocation8 [shape = 'u8[65536]{0}', space=vmem, size = 0x10000, scoped, tag = 'input window, operand 3, single buffered']
    #allocation9 [shape = 's32[1]{0}', space=sflag, size = 0x4, scoped, tag = 'scoped memory for tpu_custom_call.1']
    #allocation10 [shape = 'u8[65536]{0}', space=vmem, size = 0x10000, scoped, tag = 'input window, operand 5, single buffered']
    #allocation11 [shape = 'u8[65536]{0}', space=vmem, size = 0x10000, scoped, tag = 'input window, operand 7, single buffered']
    #allocation12 [shape = 's32[1]{0}', space=sflag, size = 0x4, scoped, tag = 'scoped memory for tpu_custom_call.1']
    #allocation13 [shape = 'u8[65536]{0}', space=vmem, size = 0x10000, scoped, tag = 'input window, operand 9, single buffered']
    #allocation14 [shape = 'u8[32768]{0}', space=vmem, size = 0x8000, scoped, tag = 'input window, operand 11']
    #allocation15 [shape = 's32[2]{0}', space=sflag, size = 0x8, scoped, tag = 'scoped memory for tpu_custom_call.1']
    #allocation16 [shape = 'u8[8192]{0}', space=vmem, size = 0x2000, scoped, tag = 'output window, operand 0']
    %17 = vsyncpa [#allocation3], 0
    %s18 = scalar_lea.sflag [#allocation3], 1
    %19 = vsyncpa %s18, 0
    %20 = vsyncpa [#allocation6], 0
    %s21 = scalar_lea.sflag [#allocation6], 1
    %22 = vsyncpa %s21, 0
    %23 = vsyncpa [#allocation9], 0
    %24 = vsyncpa [#allocation12], 0
    %25 = vsyncpa [#allocation15], 0
    %s26 = scalar_lea.sflag [#allocation15], 1
    %27 = vsyncpa %s26, 0
    %28 = vsyncpa [#allocation4], 0
    %s29 = scalar_lea.sflag [#allocation4], 1
    %30 = vsyncpa %s29, 0
    loop: start=0, step=1, limit=4
    $region2: #{tpu_custom_call.1} parent=1 // loop_pre_header
      _
    $region3: #{tpu_custom_call.1} parent=1 // loop_header
      %s32 = sphi 0, %s36
      %p33 = scmp.ge.s32.totalorder %s32, 4
      %s42 = sphi 0, %s44
      %s45 = sphi 0, %s42
      %s46 = sphi 0, %s45
      %s62 = sphi 0, %s46
      %s68 = sphi 0, %s70
      %s71 = sphi 0, %s68
      %s72 = sphi 0, %s71
      %s88 = sphi 0, %s72
      %s94 = sphi 0, %s96
      %s97 = sphi 0, %s94
      %s98 = sphi 0, %s97
      %s114 = sphi 0, %s98
      %s118 = sphi 0, %s118
      %s120 = sphi 0, %s118
      %s121 = sphi 0, %s120
      %s135 = sphi 0, %s121
      %s139 = sphi 0, %s139
      %s141 = sphi 0, %s139
      %s142 = sphi 0, %s141
      %s156 = sphi 0, %s142
      %s160 = sphi 0, %s160
      %s162 = sphi 0, %s160
      %s163 = sphi 0, %s162
      %s177 = sphi 0, %s163
      %s181 = sphi 0, %s181
      %s183 = sphi 0, %s181
      %s184 = sphi 0, %s183
      %s198 = sphi 0, %s184
      %s202 = sphi 0, %s202
      %s204 = sphi 0, %s202
      %s205 = sphi 0, %s204
      %s219 = sphi 0, %s205
      %s223 = sphi 0, %s223
      %s225 = sphi 0, %s223
      %s226 = sphi 0, %s225
      %s240 = sphi 0, %s226
      %s244 = sphi 0, %s244
      %s246 = sphi 0, %s244
      %s247 = sphi 0, %s246
      %s261 = sphi 0, %s247
      %s265 = sphi 0, %s265
      %s267 = sphi 0, %s265
      %s268 = sphi 0, %s267
      %s282 = sphi 0, %s268
      %s288 = sphi 0, %s290
      %s291 = sphi 0, %s288
      %s292 = sphi 0, %s291
      %s308 = sphi 0, %s292
      %s314 = sphi 0, %s316
      %s317 = sphi 0, %s314
      %s318 = sphi 0, %s317
      %s334 = sphi 0, %s318
    $region4: #{tpu_custom_call.1} parent=1 // loop_header_branch
      %35 = sbr.rel (%p33) target = $region8
    $region5: #{tpu_custom_call.1} parent=1 // loop_body
      %s37 = ssub.s32 %s32, 1
      %s38 = ssub.s32 %s32, 2
      %s39 = sadd.s32 %s32, 1
      %s40 = ssub.s32 %s32, %s39
      %p41 = scmp.eq.s32.totalorder %s40, 0
      %s43 = sadd.s32 %s42, 1
      %s44 = scalar_select %p41, %s42, %s43
      %p47 = pneg %p41
      %p48 = scmp.eq.s32.totalorder %s32, 1
      %p49 = por %p47, %p48
      %p50 = scmp.ne.s32.totalorder %s42, %s45
      %p51 = scmp.eq.s32.totalorder %s32, 0
      %p52 = por %p50, %p51
      %p53 = scmp.ne.s32.totalorder %s42, %s45
      %p54 = scmp.eq.s32.totalorder %s37, 1
      %p55 = por %p53, %p54
      %p56 = scmp.ne.s32.totalorder %s45, %s46
      %p57 = scmp.eq.s32.totalorder %s37, 0
      %p58 = por %p56, %p57
      %p59 = scmp.ne.s32.totalorder %s45, %s46
      %p60 = scmp.eq.s32.totalorder %s38, 1
      %p61 = por %p59, %p60
      %p63 = scmp.ne.s32.totalorder %s46, %s62
      %p64 = scmp.eq.s32.totalorder %s38, 0
      %p65 = por %p63, %p64
      %s66 = ssub.s32 %s32, %s39
      %p67 = scmp.eq.s32.totalorder %s66, 0
      %s69 = sadd.s32 %s68, 1
      %s70 = scalar_select %p67, %s68, %s69
      %p73 = pneg %p67
      %p74 = scmp.eq.s32.totalorder %s32, 1
      %p75 = por %p73, %p74
      %p76 = scmp.ne.s32.totalorder %s68, %s71
      %p77 = scmp.eq.s32.totalorder %s32, 0
      %p78 = por %p76, %p77
      %p79 = scmp.ne.s32.totalorder %s68, %s71
      %p80 = scmp.eq.s32.totalorder %s37, 1
      %p81 = por %p79, %p80
      %p82 = scmp.ne.s32.totalorder %s71, %s72
      %p83 = scmp.eq.s32.totalorder %s37, 0
      %p84 = por %p82, %p83
      %p85 = scmp.ne.s32.totalorder %s71, %s72
      %p86 = scmp.eq.s32.totalorder %s38, 1
      %p87 = por %p85, %p86
      %p89 = scmp.ne.s32.totalorder %s72, %s88
      %p90 = scmp.eq.s32.totalorder %s38, 0
      %p91 = por %p89, %p90
      %s92 = ssub.s32 %s32, %s39
      %p93 = scmp.eq.s32.totalorder %s92, 0
      %s95 = sadd.s32 %s94, 1
      %s96 = scalar_select %p93, %s94, %s95
      %p99 = pneg %p93
      %p100 = scmp.eq.s32.totalorder %s32, 1
      %p101 = por %p99, %p100
      %p102 = scmp.ne.s32.totalorder %s94, %s97
      %p103 = scmp.eq.s32.totalorder %s32, 0
      %p104 = por %p102, %p103
      %p105 = scmp.ne.s32.totalorder %s94, %s97
      %p106 = scmp.eq.s32.totalorder %s37, 1
      %p107 = por %p105, %p106
      %p108 = scmp.ne.s32.totalorder %s97, %s98
      %p109 = scmp.eq.s32.totalorder %s37, 0
      %p110 = por %p108, %p109
      %p111 = scmp.ne.s32.totalorder %s97, %s98
      %p112 = scmp.eq.s32.totalorder %s38, 1
      %p113 = por %p111, %p112
      %p115 = scmp.ne.s32.totalorder %s98, %s114
      %p116 = scmp.eq.s32.totalorder %s38, 0
      %p117 = por %p115, %p116
      %s119 = sadd.s32 %s118, 1
      %p122 = scmp.eq.s32.totalorder %s32, 1
      %p123 = scmp.ne.s32.totalorder %s118, %s120
      %p124 = scmp.eq.s32.totalorder %s32, 0
      %p125 = por %p123, %p124
      %p126 = scmp.ne.s32.totalorder %s118, %s120
      %p127 = scmp.eq.s32.totalorder %s37, 1
      %p128 = por %p126, %p127
      %p129 = scmp.ne.s32.totalorder %s120, %s121
      %p130 = scmp.eq.s32.totalorder %s37, 0
      %p131 = por %p129, %p130
      %p132 = scmp.ne.s32.totalorder %s120, %s121
      %p133 = scmp.eq.s32.totalorder %s38, 1
      %p134 = por %p132, %p133
      %p136 = scmp.ne.s32.totalorder %s121, %s135
      %p137 = scmp.eq.s32.totalorder %s38, 0
      %p138 = por %p136, %p137
      %s140 = sadd.s32 %s139, 1
      %p143 = scmp.eq.s32.totalorder %s32, 1
      %p144 = scmp.ne.s32.totalorder %s139, %s141
      %p145 = scmp.eq.s32.totalorder %s32, 0
      %p146 = por %p144, %p145
      %p147 = scmp.ne.s32.totalorder %s139, %s141
      %p148 = scmp.eq.s32.totalorder %s37, 1
      %p149 = por %p147, %p148
      %p150 = scmp.ne.s32.totalorder %s141, %s142
      %p151 = scmp.eq.s32.totalorder %s37, 0
      %p152 = por %p150, %p151
      %p153 = scmp.ne.s32.totalorder %s141, %s142
      %p154 = scmp.eq.s32.totalorder %s38, 1
      %p155 = por %p153, %p154
      %p157 = scmp.ne.s32.totalorder %s142, %s156
      %p158 = scmp.eq.s32.totalorder %s38, 0
      %p159 = por %p157, %p158
      %s161 = sadd.s32 %s160, 1
      %p164 = scmp.eq.s32.totalorder %s32, 1
      %p165 = scmp.ne.s32.totalorder %s160, %s162
      %p166 = scmp.eq.s32.totalorder %s32, 0
      %p167 = por %p165, %p166
      %p168 = scmp.ne.s32.totalorder %s160, %s162
      %p169 = scmp.eq.s32.totalorder %s37, 1
      %p170 = por %p168, %p169
      %p171 = scmp.ne.s32.totalorder %s162, %s163
      %p172 = scmp.eq.s32.totalorder %s37, 0
      %p173 = por %p171, %p172
      %p174 = scmp.ne.s32.totalorder %s162, %s163
      %p175 = scmp.eq.s32.totalorder %s38, 1
      %p176 = por %p174, %p175
      %p178 = scmp.ne.s32.totalorder %s163, %s177
      %p179 = scmp.eq.s32.totalorder %s38, 0
      %p180 = por %p178, %p179
      %s182 = sadd.s32 %s181, 1
      %p185 = scmp.eq.s32.totalorder %s32, 1
      %p186 = scmp.ne.s32.totalorder %s181, %s183
      %p187 = scmp.eq.s32.totalorder %s32, 0
      %p188 = por %p186, %p187
      %p189 = scmp.ne.s32.totalorder %s181, %s183
      %p190 = scmp.eq.s32.totalorder %s37, 1
      %p191 = por %p189, %p190
      %p192 = scmp.ne.s32.totalorder %s183, %s184
      %p193 = scmp.eq.s32.totalorder %s37, 0
      %p194 = por %p192, %p193
      %p195 = scmp.ne.s32.totalorder %s183, %s184
      %p196 = scmp.eq.s32.totalorder %s38, 1
      %p197 = por %p195, %p196
      %p199 = scmp.ne.s32.totalorder %s184, %s198
      %p200 = scmp.eq.s32.totalorder %s38, 0
      %p201 = por %p199, %p200
      %s203 = sadd.s32 %s202, 1
      %p206 = scmp.eq.s32.totalorder %s32, 1
      %p207 = scmp.ne.s32.totalorder %s202, %s204
      %p208 = scmp.eq.s32.totalorder %s32, 0
      %p209 = por %p207, %p208
      %p210 = scmp.ne.s32.totalorder %s202, %s204
      %p211 = scmp.eq.s32.totalorder %s37, 1
      %p212 = por %p210, %p211
      %p213 = scmp.ne.s32.totalorder %s204, %s205
      %p214 = scmp.eq.s32.totalorder %s37, 0
      %p215 = por %p213, %p214
      %p216 = scmp.ne.s32.totalorder %s204, %s205
      %p217 = scmp.eq.s32.totalorder %s38, 1
      %p218 = por %p216, %p217
      %p220 = scmp.ne.s32.totalorder %s205, %s219
      %p221 = scmp.eq.s32.totalorder %s38, 0
      %p222 = por %p220, %p221
      %s224 = sadd.s32 %s223, 1
      %p227 = scmp.eq.s32.totalorder %s32, 1
      %p228 = scmp.ne.s32.totalorder %s223, %s225
      %p229 = scmp.eq.s32.totalorder %s32, 0
      %p230 = por %p228, %p229
      %p231 = scmp.ne.s32.totalorder %s223, %s225
      %p232 = scmp.eq.s32.totalorder %s37, 1
      %p233 = por %p231, %p232
      %p234 = scmp.ne.s32.totalorder %s225, %s226
      %p235 = scmp.eq.s32.totalorder %s37, 0
      %p236 = por %p234, %p235
      %p237 = scmp.ne.s32.totalorder %s225, %s226
      %p238 = scmp.eq.s32.totalorder %s38, 1
      %p239 = por %p237, %p238
      %p241 = scmp.ne.s32.totalorder %s226, %s240
      %p242 = scmp.eq.s32.totalorder %s38, 0
      %p243 = por %p241, %p242
      %s245 = sadd.s32 %s244, 1
      %p248 = scmp.eq.s32.totalorder %s32, 1
      %p249 = scmp.ne.s32.totalorder %s244, %s246
      %p250 = scmp.eq.s32.totalorder %s32, 0
      %p251 = por %p249, %p250
      %p252 = scmp.ne.s32.totalorder %s244, %s246
      %p253 = scmp.eq.s32.totalorder %s37, 1
      %p254 = por %p252, %p253
      %p255 = scmp.ne.s32.totalorder %s246, %s247
      %p256 = scmp.eq.s32.totalorder %s37, 0
      %p257 = por %p255, %p256
      %p258 = scmp.ne.s32.totalorder %s246, %s247
      %p259 = scmp.eq.s32.totalorder %s38, 1
      %p260 = por %p258, %p259
      %p262 = scmp.ne.s32.totalorder %s247, %s261
      %p263 = scmp.eq.s32.totalorder %s38, 0
      %p264 = por %p262, %p263
      %s266 = sadd.s32 %s265, 1
      %p269 = scmp.eq.s32.totalorder %s32, 1
      %p270 = scmp.ne.s32.totalorder %s265, %s267
      %p271 = scmp.eq.s32.totalorder %s32, 0
      %p272 = por %p270, %p271
      %p273 = scmp.ne.s32.totalorder %s265, %s267
      %p274 = scmp.eq.s32.totalorder %s37, 1
      %p275 = por %p273, %p274
      %p276 = scmp.ne.s32.totalorder %s267, %s268
      %p277 = scmp.eq.s32.totalorder %s37, 0
      %p278 = por %p276, %p277
      %p279 = scmp.ne.s32.totalorder %s267, %s268
      %p280 = scmp.eq.s32.totalorder %s38, 1
      %p281 = por %p279, %p280
      %p283 = scmp.ne.s32.totalorder %s268, %s282
      %p284 = scmp.eq.s32.totalorder %s38, 0
      %p285 = por %p283, %p284
      %s286 = ssub.s32 %s32, %s39
      %p287 = scmp.eq.s32.totalorder %s286, 0
      %s289 = sadd.s32 %s288, 1
      %s290 = scalar_select %p287, %s288, %s289
      %p293 = pneg %p287
      %p294 = scmp.eq.s32.totalorder %s32, 1
      %p295 = por %p293, %p294
      %p296 = scmp.ne.s32.totalorder %s288, %s291
      %p297 = scmp.eq.s32.totalorder %s32, 0
      %p298 = por %p296, %p297
      %p299 = scmp.ne.s32.totalorder %s288, %s291
      %p300 = scmp.eq.s32.totalorder %s37, 1
      %p301 = por %p299, %p300
      %p302 = scmp.ne.s32.totalorder %s291, %s292
      %p303 = scmp.eq.s32.totalorder %s37, 0
      %p304 = por %p302, %p303
      %p305 = scmp.ne.s32.totalorder %s291, %s292
      %p306 = scmp.eq.s32.totalorder %s38, 1
      %p307 = por %p305, %p306
      %p309 = scmp.ne.s32.totalorder %s292, %s308
      %p310 = scmp.eq.s32.totalorder %s38, 0
      %p311 = por %p309, %p310
      %s312 = ssub.s32 %s32, %s39
      %p313 = scmp.eq.s32.totalorder %s312, 0
      %s315 = sadd.s32 %s314, 1
      %s316 = scalar_select %p313, %s314, %s315
      %p319 = pneg %p313
      %p320 = scmp.eq.s32.totalorder %s32, 1
      %p321 = por %p319, %p320
      %p322 = scmp.ne.s32.totalorder %s314, %s317
      %p323 = scmp.eq.s32.totalorder %s32, 0
      %p324 = por %p322, %p323
      %p325 = scmp.ne.s32.totalorder %s314, %s317
      %p326 = scmp.eq.s32.totalorder %s37, 1
      %p327 = por %p325, %p326
      %p328 = scmp.ne.s32.totalorder %s317, %s318
      %p329 = scmp.eq.s32.totalorder %s37, 0
      %p330 = por %p328, %p329
      %p331 = scmp.ne.s32.totalorder %s317, %s318
      %p332 = scmp.eq.s32.totalorder %s38, 1
      %p333 = por %p331, %p332
      %p335 = scmp.ne.s32.totalorder %s318, %s334
      %p336 = scmp.eq.s32.totalorder %s38, 0
      %p337 = por %p335, %p336
      %p338 = scmp.le.s32.totalorder 1, %s32
      %p339 = scmp.lt.s32.totalorder %s32, 3
      %p340 = pnand %p338, %p339
      %p341 = pneg %p340
      // Predicated region
      $region9: #{tpu_custom_call.1} parent=5 // pred_check
        _
      $region10: #{tpu_custom_call.1} parent=5 // pred_check_branch
        %343 = sbr.rel (%p340) target = $region12
      $region11: #{tpu_custom_call.1} parent=5 // pred_region
        %s344 = ssub.s32 %s32, 1
        // Predicated region
        $region13: #{tpu_custom_call.1} parent=11 // pred_check
          %p345 = pneg %p131
        $region14: #{tpu_custom_call.1} parent=11 // pred_check_branch
          %347 = sbr.rel (%p345) target = $region16
        $region15: #{tpu_custom_call.1} parent=11 // pred_region
          %s349 = ssub.s32 2048, 2048
          %350 = vsyncadd [#allocation9], %s349
          %s351 = sshll.u32 [#allocation8], 4
          %s352 = int_to_ptr.vmem [resolvable:$true] %s351
          %357 = dma.hbm_to_vmem [thread:$0]  %s3, 2048, %s352, [#allocation9], 128, 128, 8
        $region16: #{tpu_custom_call.1} parent=11 // pred_fallthru
          _
        // Predicated region
        $region17: #{tpu_custom_call.1} parent=11 // pred_check
          %p358 = pneg %p152
        $region18: #{tpu_custom_call.1} parent=11 // pred_check_branch
          %360 = sbr.rel (%p358) target = $region20
        $region19: #{tpu_custom_call.1} parent=11 // pred_region
          _
        $region20: #{tpu_custom_call.1} parent=11 // pred_fallthru
          _
        // Predicated region
        $region21: #{tpu_custom_call.1} parent=11 // pred_check
          %p361 = pneg %p173
        $region22: #{tpu_custom_call.1} parent=11 // pred_check_branch
          %363 = sbr.rel (%p361) target = $region24
        $region23: #{tpu_custom_call.1} parent=11 // pred_region
          %s365 = ssub.s32 2048, 2048
          %366 = vsyncadd [#allocation9], %s365
          %s367 = sshll.u32 [#allocation10], 4
          %s368 = int_to_ptr.vmem [resolvable:$true] %s367
          %373 = dma.hbm_to_vmem [thread:$0]  %s5, 2048, %s368, [#allocation9], 128, 128, 8
        $region24: #{tpu_custom_call.1} parent=11 // pred_fallthru
          _
        // Predicated region
        $region25: #{tpu_custom_call.1} parent=11 // pred_check
          %p374 = pneg %p194
        $region26: #{tpu_custom_call.1} parent=11 // pred_check_branch
          %376 = sbr.rel (%p374) target = $region28
        $region27: #{tpu_custom_call.1} parent=11 // pred_region
          _
        $region28: #{tpu_custom_call.1} parent=11 // pred_fallthru
          _
        // Predicated region
        $region29: #{tpu_custom_call.1} parent=11 // pred_check
          %p377 = pneg %p215
        $region30: #{tpu_custom_call.1} parent=11 // pred_check_branch
          %379 = sbr.rel (%p377) target = $region32
        $region31: #{tpu_custom_call.1} parent=11 // pred_region
          %s381 = ssub.s32 2048, 2048
          %382 = vsyncadd [#allocation12], %s381
          %s383 = sshll.u32 [#allocation11], 4
          %s384 = int_to_ptr.vmem [resolvable:$true] %s383
          %389 = dma.hbm_to_vmem [thread:$0]  %s7, 2048, %s384, [#allocation12], 128, 128, 8
        $region32: #{tpu_custom_call.1} parent=11 // pred_fallthru
          _
        // Predicated region
        $region33: #{tpu_custom_call.1} parent=11 // pred_check
          %p390 = pneg %p236
        $region34: #{tpu_custom_call.1} parent=11 // pred_check_branch
          %392 = sbr.rel (%p390) target = $region36
        $region35: #{tpu_custom_call.1} parent=11 // pred_region
          _
        $region36: #{tpu_custom_call.1} parent=11 // pred_fallthru
          _
        // Predicated region
        $region37: #{tpu_custom_call.1} parent=11 // pred_check
          %p393 = pneg %p257
        $region38: #{tpu_custom_call.1} parent=11 // pred_check_branch
          %395 = sbr.rel (%p393) target = $region40
        $region39: #{tpu_custom_call.1} parent=11 // pred_region
          %s397 = ssub.s32 2048, 2048
          %398 = vsyncadd [#allocation12], %s397
          %s399 = sshll.u32 [#allocation13], 4
          %s400 = int_to_ptr.vmem [resolvable:$true] %s399
          %405 = dma.hbm_to_vmem [thread:$0]  %s9, 2048, %s400, [#allocation12], 128, 128, 8
        $region40: #{tpu_custom_call.1} parent=11 // pred_fallthru
          _
        // Predicated region
        $region41: #{tpu_custom_call.1} parent=11 // pred_check
          %p406 = pneg %p278
        $region42: #{tpu_custom_call.1} parent=11 // pred_check_branch
          %408 = sbr.rel (%p406) target = $region44
        $region43: #{tpu_custom_call.1} parent=11 // pred_region
          _
        $region44: #{tpu_custom_call.1} parent=11 // pred_fallthru
          _
      $region12: #{tpu_custom_call.1} parent=5 // pred_fallthru
        _
      %p409 = scmp.lt.s32.totalorder %s32, 2
      // Predicated region
      $region45: #{tpu_custom_call.1} parent=5 // pred_check
        %p410 = pneg %p409
      $region46: #{tpu_custom_call.1} parent=5 // pred_check_branch
        %412 = sbr.rel (%p410) target = $region48
      $region47: #{tpu_custom_call.1} parent=5 // pred_region
        // Predicated region
        $region49: #{tpu_custom_call.1} parent=47 // pred_check
          %p413 = pneg %p52
        $region50: #{tpu_custom_call.1} parent=47 // pred_check_branch
          %415 = sbr.rel (%p413) target = $region52
        $region51: #{tpu_custom_call.1} parent=47 // pred_region
          %s416 = sand.u32 %s42, 1
          %s417 = scalar_lea.sflag [#allocation3], %s416
          %s418 = sand.u32 %s42, 1
          %s419 = smul.addr %s418, 8
          %s420 = scalar_lea.vmem [#allocation2], %s419
          %s422 = ssub.s32 128, 128
          %423 = vsyncadd %s417, %s422
          %s424 = smul.addr %s32, 128
          %s425 = scalar_lea.hbm %s0, %s424
          %s427 = sshll.u32 %s420, 4
          %s428 = int_to_ptr.vmem [resolvable:$true] %s427
          %430 = dma.hbm_to_vmem [thread:$0]  %s425, 128, %s428, %s417
        $region52: #{tpu_custom_call.1} parent=47 // pred_fallthru
          _
        // Predicated region
        $region53: #{tpu_custom_call.1} parent=47 // pred_check
          %p431 = pneg %p78
        $region54: #{tpu_custom_call.1} parent=47 // pred_check_branch
          %433 = sbr.rel (%p431) target = $region56
        $region55: #{tpu_custom_call.1} parent=47 // pred_region
          %s434 = sand.u32 %s32, 1
          %s435 = scalar_lea.sflag [#allocation6], %s434
          %s436 = sand.u32 %s68, 1
          %s437 = smul.addr %s436, 8
          %s438 = scalar_lea.vmem [#allocation5], %s437
          %s440 = ssub.s32 128, 128
          %441 = vsyncadd %s435, %s440
          %s442 = smul.addr %s32, 128
          %s443 = scalar_lea.hbm %s1, %s442
          %s445 = sshll.u32 %s438, 4
          %s446 = int_to_ptr.vmem [resolvable:$true] %s445
          %448 = dma.hbm_to_vmem [thread:$0]  %s443, 128, %s446, %s435
        $region56: #{tpu_custom_call.1} parent=47 // pred_fallthru
          _
        // Predicated region
        $region57: #{tpu_custom_call.1} parent=47 // pred_check
          %p449 = pneg %p104
        $region58: #{tpu_custom_call.1} parent=47 // pred_check_branch
          %451 = sbr.rel (%p449) target = $region60
        $region59: #{tpu_custom_call.1} parent=47 // pred_region
          %s452 = sand.u32 %s32, 1
          %s453 = scalar_lea.sflag [#allocation6], %s452
          %s454 = sand.u32 %s94, 1
          %s455 = smul.addr %s454, 8
          %s456 = scalar_lea.vmem [#allocation7], %s455
          %s458 = ssub.s32 128, 128
          %459 = vsyncadd %s453, %s458
          %s460 = smul.addr %s32, 128
          %s461 = scalar_lea.hbm %s2, %s460
          %s463 = sshll.u32 %s456, 4
          %s464 = int_to_ptr.vmem [resolvable:$true] %s463
          %466 = dma.hbm_to_vmem [thread:$0]  %s461, 128, %s464, %s453
        $region60: #{tpu_custom_call.1} parent=47 // pred_fallthru
          _
        // Predicated region
        $region61: #{tpu_custom_call.1} parent=47 // pred_check
          %p467 = pneg %p298
        $region62: #{tpu_custom_call.1} parent=47 // pred_check_branch
          %469 = sbr.rel (%p467) target = $region64
        $region63: #{tpu_custom_call.1} parent=47 // pred_region
          %s470 = sand.u32 %s288, 1
          %s471 = scalar_lea.sflag [#allocation15], %s470
          %s472 = sand.u32 %s288, 1
          %s473 = smul.addr %s472, 32
          %s474 = scalar_lea.vmem [#allocation14], %s473
          %s476 = ssub.s32 512, 512
          %477 = vsyncadd %s471, %s476
          %s478 = smul.addr %s32, 4
          %s479 = smul.addr %s478, 128
          %s480 = scalar_lea.hbm %s11, %s479
          %s481 = sshll.u32 %s474, 4
          %s482 = int_to_ptr.vmem [resolvable:$true] %s481
          %487 = dma.hbm_to_vmem [thread:$0]  %s480, 512, %s482, %s471, 128, 128, 8
        $region64: #{tpu_custom_call.1} parent=47 // pred_fallthru
          _
      $region48: #{tpu_custom_call.1} parent=5 // pred_fallthru
        _
      %p488 = scmp.le.s32.totalorder 1, %s32
      %p489 = scmp.lt.s32.totalorder %s32, 3
      %p490 = pnand %p488, %p489
      %p491 = pneg %p490
      // Predicated region
      $region65: #{tpu_custom_call.1} parent=5 // pred_check
        _
      $region66: #{tpu_custom_call.1} parent=5 // pred_check_branch
        %493 = sbr.rel (%p490) target = $region68
      $region67: #{tpu_custom_call.1} parent=5 // pred_region
        %s494 = ssub.s32 %s32, 1
        %s495 = sand.u32 %s45, 1
        %s496 = scalar_lea.sflag [#allocation3], %s495
        %s497 = sand.u32 %s45, 1
        %s498 = smul.addr %s497, 8
        %s499 = scalar_lea.vmem [#allocation2], %s498
        // Predicated region
        $region69: #{tpu_custom_call.1} parent=67 // pred_check
          %p500 = pneg %p58
        $region70: #{tpu_custom_call.1} parent=67 // pred_check_branch
          %502 = sbr.rel (%p500) target = $region72
        $region71: #{tpu_custom_call.1} parent=67 // pred_region
          %503 = dma.done %s496, 128
        $region72: #{tpu_custom_call.1} parent=67 // pred_fallthru
          _
        %s504 = sand.u32 %s37, 1
        %s505 = scalar_lea.sflag [#allocation6], %s504
        %s506 = sand.u32 %s71, 1
        %s507 = smul.addr %s506, 8
        %s508 = scalar_lea.vmem [#allocation5], %s507
        // Predicated region
        $region73: #{tpu_custom_call.1} parent=67 // pred_check
          %p509 = pneg %p84
        $region74: #{tpu_custom_call.1} parent=67 // pred_check_branch
          %511 = sbr.rel (%p509) target = $region76
        $region75: #{tpu_custom_call.1} parent=67 // pred_region
          %512 = dma.done %s505, 128
        $region76: #{tpu_custom_call.1} parent=67 // pred_fallthru
          _
        %s513 = sand.u32 %s37, 1
        %s514 = scalar_lea.sflag [#allocation6], %s513
        %s515 = sand.u32 %s97, 1
        %s516 = smul.addr %s515, 8
        %s517 = scalar_lea.vmem [#allocation7], %s516
        // Predicated region
        $region77: #{tpu_custom_call.1} parent=67 // pred_check
          %p518 = pneg %p110
        $region78: #{tpu_custom_call.1} parent=67 // pred_check_branch
          %520 = sbr.rel (%p518) target = $region80
        $region79: #{tpu_custom_call.1} parent=67 // pred_region
          %521 = dma.done %s514, 128
        $region80: #{tpu_custom_call.1} parent=67 // pred_fallthru
          _
        // Predicated region
        $region81: #{tpu_custom_call.1} parent=67 // pred_check
          %p522 = pneg %p131
        $region82: #{tpu_custom_call.1} parent=67 // pred_check_branch
          %524 = sbr.rel (%p522) target = $region84
        $region83: #{tpu_custom_call.1} parent=67 // pred_region
          %525 = dma.done [#allocation9], 2048
        $region84: #{tpu_custom_call.1} parent=67 // pred_fallthru
          _
        // Predicated region
        $region85: #{tpu_custom_call.1} parent=67 // pred_check
          %p526 = pneg %p173
        $region86: #{tpu_custom_call.1} parent=67 // pred_check_branch
          %528 = sbr.rel (%p526) target = $region88
        $region87: #{tpu_custom_call.1} parent=67 // pred_region
          %529 = dma.done [#allocation9], 2048
        $region88: #{tpu_custom_call.1} parent=67 // pred_fallthru
          _
        // Predicated region
        $region89: #{tpu_custom_call.1} parent=67 // pred_check
          %p530 = pneg %p215
        $region90: #{tpu_custom_call.1} parent=67 // pred_check_branch
          %532 = sbr.rel (%p530) target = $region92
        $region91: #{tpu_custom_call.1} parent=67 // pred_region
          %533 = dma.done [#allocation12], 2048
        $region92: #{tpu_custom_call.1} parent=67 // pred_fallthru
          _
        // Predicated region
        $region93: #{tpu_custom_call.1} parent=67 // pred_check
          %p534 = pneg %p257
        $region94: #{tpu_custom_call.1} parent=67 // pred_check_branch
          %536 = sbr.rel (%p534) target = $region96
        $region95: #{tpu_custom_call.1} parent=67 // pred_region
          %537 = dma.done [#allocation12], 2048
        $region96: #{tpu_custom_call.1} parent=67 // pred_fallthru
          _
        %s538 = sand.u32 %s291, 1
        %s539 = scalar_lea.sflag [#allocation15], %s538
        %s540 = sand.u32 %s291, 1
        %s541 = smul.addr %s540, 32
        %s542 = scalar_lea.vmem [#allocation14], %s541
        // Predicated region
        $region97: #{tpu_custom_call.1} parent=67 // pred_check
          %p543 = pneg %p304
        $region98: #{tpu_custom_call.1} parent=67 // pred_check_branch
          %545 = sbr.rel (%p543) target = $region100
        $region99: #{tpu_custom_call.1} parent=67 // pred_region
          %546 = dma.done %s539, 512
        $region100: #{tpu_custom_call.1} parent=67 // pred_fallthru
          _
        %s547 = sand.u32 %s45, 1
        %s548 = scalar_lea.sflag [#allocation3], %s547
        %s549 = sand.u32 %s45, 1
        %s550 = smul.addr %s549, 8
        %s551 = scalar_lea.vmem [#allocation2], %s550
        %p552 = pneg %p58
        %p553 = pneg %p55
        %s554 = sand.u32 %s37, 1
        %s555 = scalar_lea.sflag [#allocation6], %s554
        %s556 = sand.u32 %s71, 1
        %s557 = smul.addr %s556, 8
        %s558 = scalar_lea.vmem [#allocation5], %s557
        %p559 = pneg %p84
        %p560 = pneg %p81
        %s561 = sand.u32 %s37, 1
        %s562 = scalar_lea.sflag [#allocation6], %s561
        %s563 = sand.u32 %s97, 1
        %s564 = smul.addr %s563, 8
        %s565 = scalar_lea.vmem [#allocation7], %s564
        %p566 = pneg %p110
        %p567 = pneg %p107
        %p568 = pneg %p131
        %p569 = pneg %p128
        %p570 = pneg %p152
        %p571 = pneg %p149
        %p572 = pneg %p173
        %p573 = pneg %p170
        %p574 = pneg %p194
        %p575 = pneg %p191
        %p576 = pneg %p215
        %p577 = pneg %p212
        %p578 = pneg %p236
        %p579 = pneg %p233
        %p580 = pneg %p257
        %p581 = pneg %p254
        %p582 = pneg %p278
        %p583 = pneg %p275
        %s584 = sand.u32 %s291, 1
        %s585 = scalar_lea.sflag [#allocation15], %s584
        %s586 = sand.u32 %s291, 1
        %s587 = smul.addr %s586, 32
        %s588 = scalar_lea.vmem [#allocation14], %s587
        %p589 = pneg %p304
        %p590 = pneg %p301
        %p591 = pneg %p330
        %p592 = pneg %p327
        %s593 = sand.u32 %s317, 1
        %s594 = scalar_lea.sflag [#allocation4], %s593
        %s595 = sand.u32 %s317, 1
        %s596 = smul.addr %s595, 8
        %s597 = scalar_lea.vmem [#allocation16], %s596
        %v598 = vld [vmem:[%s499] sm:$0xff]
        %v599 = vld [vmem:[%s508] sm:$0xff]
        %v600 = vld [vmem:[%s517] sm:$0xff]
        %v601 = vld [vmem:[#allocation8] sm:$0xff]
        %v602 = vld [vmem:[#allocation8 + $0x8] sm:$0xff]
        %v603 = vld [vmem:[#allocation8 + $0x10] sm:$0xff]
        %v604 = vld [vmem:[#allocation8 + $0x18] sm:$0xff]
        %v605 = vld [vmem:[#allocation8 + $0x20] sm:$0xff]
        %v606 = vld [vmem:[#allocation8 + $0x28] sm:$0xff]
        %v607 = vld [vmem:[#allocation8 + $0x30] sm:$0xff]
        %v608 = vld [vmem:[#allocation8 + $0x38] sm:$0xff]
        %v609 = vld [vmem:[#allocation8 + $0x40] sm:$0xff]
        %v610 = vld [vmem:[#allocation8 + $0x48] sm:$0xff]
        %v611 = vld [vmem:[#allocation8 + $0x50] sm:$0xff]
        %v612 = vld [vmem:[#allocation8 + $0x58] sm:$0xff]
        %v613 = vld [vmem:[#allocation8 + $0x60] sm:$0xff]
        %v614 = vld [vmem:[#allocation8 + $0x68] sm:$0xff]
        %v615 = vld [vmem:[#allocation8 + $0x70] sm:$0xff]
        %v616 = vld [vmem:[#allocation8 + $0x78] sm:$0xff]
        %v617 = vld [vmem:[%s4] sm:$0x1]
        %v619 = vlaneseq
        %v620 = vshrl.u32 %v619, 7
        %v621 = vsub.s32 0, %v620
        %v622 = vrot.slane %v617, %v621
        %624 = vmatprep.subr.mxu0 0.0
        %625 = vmatpush1.msra.mxu0 %v616
        %626 = vmatprep.subr.mxu0 0.0
        %627 = vmatpush1.msra.mxu0 %v615
        %628 = vmatprep.subr.mxu0 0.0
        %629 = vmatpush1.msra.mxu0 %v614
        %630 = vmatprep.subr.mxu0 0.0
        %631 = vmatpush1.msra.mxu0 %v613
        %632 = vmatprep.subr.mxu0 0.0
        %633 = vmatpush1.msra.mxu0 %v612
        %634 = vmatprep.subr.mxu0 0.0
        %635 = vmatpush1.msra.mxu0 %v611
        %636 = vmatprep.subr.mxu0 0.0
        %637 = vmatpush1.msra.mxu0 %v610
        %638 = vmatprep.subr.mxu0 0.0
        %639 = vmatpush1.msra.mxu0 %v609
        %640 = vmatprep.subr.mxu0 0.0
        %641 = vmatpush1.msra.mxu0 %v608
        %642 = vmatprep.subr.mxu0 0.0
        %643 = vmatpush1.msra.mxu0 %v607
        %644 = vmatprep.subr.mxu0 0.0
        %645 = vmatpush1.msra.mxu0 %v606
        %646 = vmatprep.subr.mxu0 0.0
        %647 = vmatpush1.msra.mxu0 %v605
        %648 = vmatprep.subr.mxu0 0.0
        %649 = vmatpush1.msra.mxu0 %v604
        %650 = vmatprep.subr.mxu0 0.0
        %651 = vmatpush1.msra.mxu0 %v603
        %652 = vmatprep.subr.mxu0 0.0
        %653 = vmatpush1.msra.mxu0 %v602
        %654 = vmatprep.subr.mxu0 0.0
        %655 = vmatpush1.msra.mxu0 %v601
        %656 = vmatprep.subr.mxu0 0.0
        %657 = vmatpush2.msra.mxu0 0.0
        %658 = vmatprep.subr.mxu0 0.0
        %659 = vmatpush2.msra.mxu0 0.0
        %660 = vmatprep.subr.mxu0 0.0
        %661 = vmatpush2.msra.mxu0 0.0
        %662 = vmatprep.subr.mxu0 0.0
        %663 = vmatpush2.msra.mxu0 0.0
        %664 = vmatprep.subr.mxu0 0.0
        %665 = vmatpush2.msra.mxu0 0.0
        %666 = vmatprep.subr.mxu0 0.0
        %667 = vmatpush2.msra.mxu0 0.0
        %668 = vmatprep.subr.mxu0 0.0
        %669 = vmatpush2.msra.mxu0 0.0
        %670 = vmatprep.subr.mxu0 0.0
        %671 = vmatpush2.msra.mxu0 0.0
        %672 = vmatprep.subr.mxu0 0.0
        %673 = vmatpush2.msra.mxu0 0.0
        %674 = vmatprep.subr.mxu0 0.0
        %675 = vmatpush2.msra.mxu0 0.0
        %676 = vmatprep.subr.mxu0 0.0
        %677 = vmatpush2.msra.mxu0 0.0
        %678 = vmatprep.subr.mxu0 0.0
        %679 = vmatpush2.msra.mxu0 0.0
        %680 = vmatprep.subr.mxu0 0.0
        %681 = vmatpush2.msra.mxu0 0.0
        %682 = vmatprep.subr.mxu0 0.0
        %683 = vmatpush2.msra.mxu0 0.0
        %684 = vmatprep.subr.mxu0 0.0
        %685 = vmatpush2.msra.mxu0 0.0
        %686 = vmatprep.subr.mxu0 0.0
        %687 = vmatpush2.msra.mxu0 0.0
        %688 = vmatprep.mubr.f32.mxu0 0.0
        %689 = vmatmul.mubr.f32.gmra.mxu0 %v598
        %v690 = vpop.f32.mrf.mxu0
        %v691 = vadd.f32 %v622, %v690
        %v692 = vpop.f32.mrf.mxu0
        %693 = vdwg.mxu0
        %v694 = vld [vmem:[#allocation10] sm:$0xff]
        %v695 = vld [vmem:[#allocation10 + $0x8] sm:$0xff]
        %v696 = vld [vmem:[#allocation10 + $0x10] sm:$0xff]
        %v697 = vld [vmem:[#allocation10 + $0x18] sm:$0xff]
        %v698 = vld [vmem:[#allocation10 + $0x20] sm:$0xff]
        %v699 = vld [vmem:[#allocation10 + $0x28] sm:$0xff]
        %v700 = vld [vmem:[#allocation10 + $0x30] sm:$0xff]
        %v701 = vld [vmem:[#allocation10 + $0x38] sm:$0xff]
        %v702 = vld [vmem:[#allocation10 + $0x40] sm:$0xff]
        %v703 = vld [vmem:[#allocation10 + $0x48] sm:$0xff]
        %v704 = vld [vmem:[#allocation10 + $0x50] sm:$0xff]
        %v705 = vld [vmem:[#allocation10 + $0x58] sm:$0xff]
        %v706 = vld [vmem:[#allocation10 + $0x60] sm:$0xff]
        %v707 = vld [vmem:[#allocation10 + $0x68] sm:$0xff]
        %v708 = vld [vmem:[#allocation10 + $0x70] sm:$0xff]
        %v709 = vld [vmem:[#allocation10 + $0x78] sm:$0xff]
        %v710 = vld [vmem:[%s6] sm:$0x1]
        %v712 = vlaneseq
        %v713 = vshrl.u32 %v712, 7
        %v714 = vsub.s32 0, %v713
        %v715 = vrot.slane %v710, %v714
        %717 = vmatprep.subr.mxu0 0.0
        %718 = vmatpush1.msra.mxu0 %v709
        %719 = vmatprep.subr.mxu0 0.0
        %720 = vmatpush1.msra.mxu0 %v708
        %721 = vmatprep.subr.mxu0 0.0
        %722 = vmatpush1.msra.mxu0 %v707
        %723 = vmatprep.subr.mxu0 0.0
        %724 = vmatpush1.msra.mxu0 %v706
        %725 = vmatprep.subr.mxu0 0.0
        %726 = vmatpush1.msra.mxu0 %v705
        %727 = vmatprep.subr.mxu0 0.0
        %728 = vmatpush1.msra.mxu0 %v704
        %729 = vmatprep.subr.mxu0 0.0
        %730 = vmatpush1.msra.mxu0 %v703
        %731 = vmatprep.subr.mxu0 0.0
        %732 = vmatpush1.msra.mxu0 %v702
        %733 = vmatprep.subr.mxu0 0.0
        %734 = vmatpush1.msra.mxu0 %v701
        %735 = vmatprep.subr.mxu0 0.0
        %736 = vmatpush1.msra.mxu0 %v700
        %737 = vmatprep.subr.mxu0 0.0
        %738 = vmatpush1.msra.mxu0 %v699
        %739 = vmatprep.subr.mxu0 0.0
        %740 = vmatpush1.msra.mxu0 %v698
        %741 = vmatprep.subr.mxu0 0.0
        %742 = vmatpush1.msra.mxu0 %v697
        %743 = vmatprep.subr.mxu0 0.0
        %744 = vmatpush1.msra.mxu0 %v696
        %745 = vmatprep.subr.mxu0 0.0
        %746 = vmatpush1.msra.mxu0 %v695
        %747 = vmatprep.subr.mxu0 0.0
        %748 = vmatpush1.msra.mxu0 %v694
        %749 = vmatprep.subr.mxu0 0.0
        %750 = vmatpush2.msra.mxu0 0.0
        %751 = vmatprep.subr.mxu0 0.0
        %752 = vmatpush2.msra.mxu0 0.0
        %753 = vmatprep.subr.mxu0 0.0
        %754 = vmatpush2.msra.mxu0 0.0
        %755 = vmatprep.subr.mxu0 0.0
        %756 = vmatpush2.msra.mxu0 0.0
        %757 = vmatprep.subr.mxu0 0.0
        %758 = vmatpush2.msra.mxu0 0.0
        %759 = vmatprep.subr.mxu0 0.0
        %760 = vmatpush2.msra.mxu0 0.0
        %761 = vmatprep.subr.mxu0 0.0
        %762 = vmatpush2.msra.mxu0 0.0
        %763 = vmatprep.subr.mxu0 0.0
        %764 = vmatpush2.msra.mxu0 0.0
        %765 = vmatprep.subr.mxu0 0.0
        %766 = vmatpush2.msra.mxu0 0.0
        %767 = vmatprep.subr.mxu0 0.0
        %768 = vmatpush2.msra.mxu0 0.0
        %769 = vmatprep.subr.mxu0 0.0
        %770 = vmatpush2.msra.mxu0 0.0
        %771 = vmatprep.subr.mxu0 0.0
        %772 = vmatpush2.msra.mxu0 0.0
        %773 = vmatprep.subr.mxu0 0.0
        %774 = vmatpush2.msra.mxu0 0.0
        %775 = vmatprep.subr.mxu0 0.0
        %776 = vmatpush2.msra.mxu0 0.0
        %777 = vmatprep.subr.mxu0 0.0
        %778 = vmatpush2.msra.mxu0 0.0
        %779 = vmatprep.subr.mxu0 0.0
        %780 = vmatpush2.msra.mxu0 0.0
        %781 = vmatprep.mubr.f32.mxu0 0.0
        %782 = vmatmul.mubr.f32.gmra.mxu0 %v599
        %v783 = vpop.f32.mrf.mxu0
        %v784 = vadd.f32 %v715, %v783
        %v785 = vpop.f32.mrf.mxu0
        %786 = vdwg.mxu0
        %v787 = vld [vmem:[#allocation11] sm:$0xff]
        %v788 = vld [vmem:[#allocation11 + $0x8] sm:$0xff]
        %v789 = vld [vmem:[#allocation11 + $0x10] sm:$0xff]
        %v790 = vld [vmem:[#allocation11 + $0x18] sm:$0xff]
        %v791 = vld [vmem:[#allocation11 + $0x20] sm:$0xff]
        %v792 = vld [vmem:[#allocation11 + $0x28] sm:$0xff]
        %v793 = vld [vmem:[#allocation11 + $0x30] sm:$0xff]
        %v794 = vld [vmem:[#allocation11 + $0x38] sm:$0xff]
        %v795 = vld [vmem:[#allocation11 + $0x40] sm:$0xff]
        %v796 = vld [vmem:[#allocation11 + $0x48] sm:$0xff]
        %v797 = vld [vmem:[#allocation11 + $0x50] sm:$0xff]
        %v798 = vld [vmem:[#allocation11 + $0x58] sm:$0xff]
        %v799 = vld [vmem:[#allocation11 + $0x60] sm:$0xff]
        %v800 = vld [vmem:[#allocation11 + $0x68] sm:$0xff]
        %v801 = vld [vmem:[#allocation11 + $0x70] sm:$0xff]
        %v802 = vld [vmem:[#allocation11 + $0x78] sm:$0xff]
        %v803 = vld [vmem:[%s8] sm:$0x1]
        %v805 = vlaneseq
        %v806 = vshrl.u32 %v805, 7
        %v807 = vsub.s32 0, %v806
        %v808 = vrot.slane %v803, %v807
        %810 = vmatprep.subr.mxu0 0.0
        %811 = vmatpush1.msra.mxu0 %v802
        %812 = vmatprep.subr.mxu0 0.0
        %813 = vmatpush1.msra.mxu0 %v801
        %814 = vmatprep.subr.mxu0 0.0
        %815 = vmatpush1.msra.mxu0 %v800
        %816 = vmatprep.subr.mxu0 0.0
        %817 = vmatpush1.msra.mxu0 %v799
        %818 = vmatprep.subr.mxu0 0.0
        %819 = vmatpush1.msra.mxu0 %v798
        %820 = vmatprep.subr.mxu0 0.0
        %821 = vmatpush1.msra.mxu0 %v797
        %822 = vmatprep.subr.mxu0 0.0
        %823 = vmatpush1.msra.mxu0 %v796
        %824 = vmatprep.subr.mxu0 0.0
        %825 = vmatpush1.msra.mxu0 %v795
        %826 = vmatprep.subr.mxu0 0.0
        %827 = vmatpush1.msra.mxu0 %v794
        %828 = vmatprep.subr.mxu0 0.0
        %829 = vmatpush1.msra.mxu0 %v793
        %830 = vmatprep.subr.mxu0 0.0
        %831 = vmatpush1.msra.mxu0 %v792
        %832 = vmatprep.subr.mxu0 0.0
        %833 = vmatpush1.msra.mxu0 %v791
        %834 = vmatprep.subr.mxu0 0.0
        %835 = vmatpush1.msra.mxu0 %v790
        %836 = vmatprep.subr.mxu0 0.0
        %837 = vmatpush1.msra.mxu0 %v789
        %838 = vmatprep.subr.mxu0 0.0
        %839 = vmatpush1.msra.mxu0 %v788
        %840 = vmatprep.subr.mxu0 0.0
        %841 = vmatpush1.msra.mxu0 %v787
        %842 = vmatprep.subr.mxu0 0.0
        %843 = vmatpush2.msra.mxu0 0.0
        %844 = vmatprep.subr.mxu0 0.0
        %845 = vmatpush2.msra.mxu0 0.0
        %846 = vmatprep.subr.mxu0 0.0
        %847 = vmatpush2.msra.mxu0 0.0
        %848 = vmatprep.subr.mxu0 0.0
        %849 = vmatpush2.msra.mxu0 0.0
        %850 = vmatprep.subr.mxu0 0.0
        %851 = vmatpush2.msra.mxu0 0.0
        %852 = vmatprep.subr.mxu0 0.0
        %853 = vmatpush2.msra.mxu0 0.0
        %854 = vmatprep.subr.mxu0 0.0
        %855 = vmatpush2.msra.mxu0 0.0
        %856 = vmatprep.subr.mxu0 0.0
        %857 = vmatpush2.msra.mxu0 0.0
        %858 = vmatprep.subr.mxu0 0.0
        %859 = vmatpush2.msra.mxu0 0.0
        %860 = vmatprep.subr.mxu0 0.0
        %861 = vmatpush2.msra.mxu0 0.0
        %862 = vmatprep.subr.mxu0 0.0
        %863 = vmatpush2.msra.mxu0 0.0
        %864 = vmatprep.subr.mxu0 0.0
        %865 = vmatpush2.msra.mxu0 0.0
        %866 = vmatprep.subr.mxu0 0.0
        %867 = vmatpush2.msra.mxu0 0.0
        %868 = vmatprep.subr.mxu0 0.0
        %869 = vmatpush2.msra.mxu0 0.0
        %870 = vmatprep.subr.mxu0 0.0
        %871 = vmatpush2.msra.mxu0 0.0
        %872 = vmatprep.subr.mxu0 0.0
        %873 = vmatpush2.msra.mxu0 0.0
        %874 = vmatprep.mubr.f32.mxu0 0.0
        %875 = vmatmul.mubr.f32.gmra.mxu0 %v600
        %v876 = vpop.f32.mrf.mxu0
        %v877 = vadd.f32 %v808, %v876
        %v878 = vpop.f32.mrf.mxu0
        %879 = vdwg.mxu0
        %v880 = vmul.f32 %v691, 0.17677669
        %v881 = vld [vmem:[%s542] sm:$0xff]
        %v882 = vld [vmem:[%s542 + $0x8] sm:$0xff]
        %v883 = vld [vmem:[%s542 + $0x10] sm:$0xff]
        %v884 = vld [vmem:[%s542 + $0x18] sm:$0xff]
        %vm885 = vcmask 261120
        %v887 = vsel %vm885, %v880, 0
        %v890 = vsel %vm885, %v784, 0
        %892 = vmatprep.subr.mxu0 0.0
        %893 = vmatpush1.xpose.msra.mxu0 0.0
        %894 = vmatprep.subr.mxu0 0.0
        %895 = vmatpush1.xpose.msra.mxu0 0.0
        %896 = vmatprep.subr.mxu0 0.0
        %897 = vmatpush1.xpose.msra.mxu0 0.0
        %898 = vmatprep.subr.mxu0 0.0
        %899 = vmatpush1.xpose.msra.mxu0 0.0
        %900 = vmatprep.subr.mxu0 0.0
        %901 = vmatpush1.xpose.msra.mxu0 0.0
        %902 = vmatprep.subr.mxu0 0.0
        %903 = vmatpush1.xpose.msra.mxu0 0.0
        %904 = vmatprep.subr.mxu0 0.0
        %905 = vmatpush1.xpose.msra.mxu0 0.0
        %906 = vmatprep.subr.mxu0 0.0
        %907 = vmatpush1.xpose.msra.mxu0 0.0
        %908 = vmatprep.subr.mxu0 0.0
        %909 = vmatpush1.xpose.msra.mxu0 0.0
        %910 = vmatprep.subr.mxu0 0.0
        %911 = vmatpush1.xpose.msra.mxu0 0.0
        %912 = vmatprep.subr.mxu0 0.0
        %913 = vmatpush1.xpose.msra.mxu0 0.0
        %914 = vmatprep.subr.mxu0 0.0
        %915 = vmatpush1.xpose.msra.mxu0 0.0
        %916 = vmatprep.subr.mxu0 0.0
        %917 = vmatpush1.xpose.msra.mxu0 0.0
        %918 = vmatprep.subr.mxu0 0.0
        %919 = vmatpush1.xpose.msra.mxu0 0.0
        %920 = vmatprep.subr.mxu0 0.0
        %921 = vmatpush1.xpose.msra.mxu0 0.0
        %922 = vmatprep.subr.mxu0 0.0
        %923 = vmatpush1.xpose.msra.mxu0 %v890
        %924 = vmatprep.subr.mxu0 0.0
        %925 = vmatpush2.xpose.msra.mxu0 0.0
        %926 = vmatprep.subr.mxu0 0.0
        %927 = vmatpush2.xpose.msra.mxu0 0.0
        %928 = vmatprep.subr.mxu0 0.0
        %929 = vmatpush2.xpose.msra.mxu0 0.0
        %930 = vmatprep.subr.mxu0 0.0
        %931 = vmatpush2.xpose.msra.mxu0 0.0
        %932 = vmatprep.subr.mxu0 0.0
        %933 = vmatpush2.xpose.msra.mxu0 0.0
        %934 = vmatprep.subr.mxu0 0.0
        %935 = vmatpush2.xpose.msra.mxu0 0.0
        %936 = vmatprep.subr.mxu0 0.0
        %937 = vmatpush2.xpose.msra.mxu0 0.0
        %938 = vmatprep.subr.mxu0 0.0
        %939 = vmatpush2.xpose.msra.mxu0 0.0
        %940 = vmatprep.subr.mxu0 0.0
        %941 = vmatpush2.xpose.msra.mxu0 0.0
        %942 = vmatprep.subr.mxu0 0.0
        %943 = vmatpush2.xpose.msra.mxu0 0.0
        %944 = vmatprep.subr.mxu0 0.0
        %945 = vmatpush2.xpose.msra.mxu0 0.0
        %946 = vmatprep.subr.mxu0 0.0
        %947 = vmatpush2.xpose.msra.mxu0 0.0
        %948 = vmatprep.subr.mxu0 0.0
        %949 = vmatpush2.xpose.msra.mxu0 0.0
        %950 = vmatprep.subr.mxu0 0.0
        %951 = vmatpush2.xpose.msra.mxu0 0.0
        %952 = vmatprep.subr.mxu0 0.0
        %953 = vmatpush2.xpose.msra.mxu0 0.0
        %954 = vmatprep.subr.mxu0 0.0
        %955 = vmatpush2.xpose.msra.mxu0 0.0
        %956 = vmatprep.mubr.f32.mxu0 0.0
        %957 = vmatmul.mubr.f32.gmra.mxu0 %v887
        %v958 = vpop.f32.mrf.mxu0
        %v959 = vadd.f32 %v881, %v958
        %v960 = vpop.f32.mrf.mxu0
        %961 = vdwg.mxu0
        %vm962 = vcmask 64512
        %v963 = vsel %vm962, %v959, -inf
        %964 = vmax.xlane.f32.xlu0 %v963
        %v965 = vpop.xlane.xlu0 %964
        %v966 = vsub.f32 %v959, %v965
        %v967 = vmul.f32 %v966, 1.442695
        %v968 = vpow.pop %v967
        %v969 = vsel %vm962, %v968, 0.0
        %970 = vadd.xlane.f32.xlu0 %v969
        %v971 = vpop.xlane.xlu0 %970
        %v972 = vrcp.pop %v971
        %v973 = vmul.f32 %v968, %v972
        %v975 = vsel %vm962, %v973, 0
        %977 = vmatprep.subr.mxu0 0.0
        %978 = vmatpush1.msra.mxu0 0.0
        %979 = vmatprep.subr.mxu0 0.0
        %980 = vmatpush1.msra.mxu0 0.0
        %981 = vmatprep.subr.mxu0 0.0
        %982 = vmatpush1.msra.mxu0 0.0
        %983 = vmatprep.subr.mxu0 0.0
        %984 = vmatpush1.msra.mxu0 0.0
        %985 = vmatprep.subr.mxu0 0.0
        %986 = vmatpush1.msra.mxu0 0.0
        %987 = vmatprep.subr.mxu0 0.0
        %988 = vmatpush1.msra.mxu0 0.0
        %989 = vmatprep.subr.mxu0 0.0
        %990 = vmatpush1.msra.mxu0 0.0
        %991 = vmatprep.subr.mxu0 0.0
        %992 = vmatpush1.msra.mxu0 0.0
        %993 = vmatprep.subr.mxu0 0.0
        %994 = vmatpush1.msra.mxu0 0.0
        %995 = vmatprep.subr.mxu0 0.0
        %996 = vmatpush1.msra.mxu0 0.0
        %997 = vmatprep.subr.mxu0 0.0
        %998 = vmatpush1.msra.mxu0 0.0
        %999 = vmatprep.subr.mxu0 0.0
        %1000 = vmatpush1.msra.mxu0 0.0
        %1001 = vmatprep.subr.mxu0 0.0
        %1002 = vmatpush1.msra.mxu0 0.0
        %1003 = vmatprep.subr.mxu0 0.0
        %1004 = vmatpush1.msra.mxu0 0.0
        %1005 = vmatprep.subr.mxu0 0.0
        %1006 = vmatpush1.msra.mxu0 0.0
        %1007 = vmatprep.subr.mxu0 0.0
        %1008 = vmatpush1.msra.mxu0 %v877
        %1009 = vmatprep.subr.mxu0 0.0
        %1010 = vmatpush2.msra.mxu0 0.0
        %1011 = vmatprep.subr.mxu0 0.0
        %1012 = vmatpush2.msra.mxu0 0.0
        %1013 = vmatprep.subr.mxu0 0.0
        %1014 = vmatpush2.msra.mxu0 0.0
        %1015 = vmatprep.subr.mxu0 0.0
        %1016 = vmatpush2.msra.mxu0 0.0
        %1017 = vmatprep.subr.mxu0 0.0
        %1018 = vmatpush2.msra.mxu0 0.0
        %1019 = vmatprep.subr.mxu0 0.0
        %1020 = vmatpush2.msra.mxu0 0.0
        %1021 = vmatprep.subr.mxu0 0.0
        %1022 = vmatpush2.msra.mxu0 0.0
        %1023 = vmatprep.subr.mxu0 0.0
        %1024 = vmatpush2.msra.mxu0 0.0
        %1025 = vmatprep.subr.mxu0 0.0
        %1026 = vmatpush2.msra.mxu0 0.0
        %1027 = vmatprep.subr.mxu0 0.0
        %1028 = vmatpush2.msra.mxu0 0.0
        %1029 = vmatprep.subr.mxu0 0.0
        %1030 = vmatpush2.msra.mxu0 0.0
        %1031 = vmatprep.subr.mxu0 0.0
        %1032 = vmatpush2.msra.mxu0 0.0
        %1033 = vmatprep.subr.mxu0 0.0
        %1034 = vmatpush2.msra.mxu0 0.0
        %1035 = vmatprep.subr.mxu0 0.0
        %1036 = vmatpush2.msra.mxu0 0.0
        %1037 = vmatprep.subr.mxu0 0.0
        %1038 = vmatpush2.msra.mxu0 0.0
        %1039 = vmatprep.subr.mxu0 0.0
        %1040 = vmatpush2.msra.mxu0 0.0
        %1041 = vmatprep.mubr.f32.mxu0 0.0
        %1042 = vmatmul.mubr.f32.gmra.mxu0 %v975
        %v1043 = vpop.f32.mrf.mxu0
        %v1044 = vadd.f32 0.0, %v1043
        %v1045 = vpop.f32.mrf.mxu0
        %1046 = vdwg.mxu0
        %1047 = vrot.lane.b32.xlu0 %v880, 96
        %v1048 = vpop.permute.xlu0 %1047
        %1049 = vrot.lane.b32.xlu0 %v784, 96
        %v1050 = vpop.permute.xlu0 %1049
        %v1051 = vsel %vm885, %v1048, 0
        %v1053 = vsel %vm885, %v1050, 0
        %1055 = vmatprep.subr.mxu0 0.0
        %1056 = vmatpush1.xpose.msra.mxu0 0.0
        %1057 = vmatprep.subr.mxu0 0.0
        %1058 = vmatpush1.xpose.msra.mxu0 0.0
        %1059 = vmatprep.subr.mxu0 0.0
        %1060 = vmatpush1.xpose.msra.mxu0 0.0
        %1061 = vmatprep.subr.mxu0 0.0
        %1062 = vmatpush1.xpose.msra.mxu0 0.0
        %1063 = vmatprep.subr.mxu0 0.0
        %1064 = vmatpush1.xpose.msra.mxu0 0.0
        %1065 = vmatprep.subr.mxu0 0.0
        %1066 = vmatpush1.xpose.msra.mxu0 0.0
        %1067 = vmatprep.subr.mxu0 0.0
        %1068 = vmatpush1.xpose.msra.mxu0 0.0
        %1069 = vmatprep.subr.mxu0 0.0
        %1070 = vmatpush1.xpose.msra.mxu0 0.0
        %1071 = vmatprep.subr.mxu0 0.0
        %1072 = vmatpush1.xpose.msra.mxu0 0.0
        %1073 = vmatprep.subr.mxu0 0.0
        %1074 = vmatpush1.xpose.msra.mxu0 0.0
        %1075 = vmatprep.subr.mxu0 0.0
        %1076 = vmatpush1.xpose.msra.mxu0 0.0
        %1077 = vmatprep.subr.mxu0 0.0
        %1078 = vmatpush1.xpose.msra.mxu0 0.0
        %1079 = vmatprep.subr.mxu0 0.0
        %1080 = vmatpush1.xpose.msra.mxu0 0.0
        %1081 = vmatprep.subr.mxu0 0.0
        %1082 = vmatpush1.xpose.msra.mxu0 0.0
        %1083 = vmatprep.subr.mxu0 0.0
        %1084 = vmatpush1.xpose.msra.mxu0 0.0
        %1085 = vmatprep.subr.mxu0 0.0
        %1086 = vmatpush1.xpose.msra.mxu0 %v1053
        %1087 = vmatprep.subr.mxu0 0.0
        %1088 = vmatpush2.xpose.msra.mxu0 0.0
        %1089 = vmatprep.subr.mxu0 0.0
        %1090 = vmatpush2.xpose.msra.mxu0 0.0
        %1091 = vmatprep.subr.mxu0 0.0
        %1092 = vmatpush2.xpose.msra.mxu0 0.0
        %1093 = vmatprep.subr.mxu0 0.0
        %1094 = vmatpush2.xpose.msra.mxu0 0.0
        %1095 = vmatprep.subr.mxu0 0.0
        %1096 = vmatpush2.xpose.msra.mxu0 0.0
        %1097 = vmatprep.subr.mxu0 0.0
        %1098 = vmatpush2.xpose.msra.mxu0 0.0
        %1099 = vmatprep.subr.mxu0 0.0
        %1100 = vmatpush2.xpose.msra.mxu0 0.0
        %1101 = vmatprep.subr.mxu0 0.0
        %1102 = vmatpush2.xpose.msra.mxu0 0.0
        %1103 = vmatprep.subr.mxu0 0.0
        %1104 = vmatpush2.xpose.msra.mxu0 0.0
        %1105 = vmatprep.subr.mxu0 0.0
        %1106 = vmatpush2.xpose.msra.mxu0 0.0
        %1107 = vmatprep.subr.mxu0 0.0
        %1108 = vmatpush2.xpose.msra.mxu0 0.0
        %1109 = vmatprep.subr.mxu0 0.0
        %1110 = vmatpush2.xpose.msra.mxu0 0.0
        %1111 = vmatprep.subr.mxu0 0.0
        %1112 = vmatpush2.xpose.msra.mxu0 0.0
        %1113 = vmatprep.subr.mxu0 0.0
        %1114 = vmatpush2.xpose.msra.mxu0 0.0
        %1115 = vmatprep.subr.mxu0 0.0
        %1116 = vmatpush2.xpose.msra.mxu0 0.0
        %1117 = vmatprep.subr.mxu0 0.0
        %1118 = vmatpush2.xpose.msra.mxu0 0.0
        %1119 = vmatprep.mubr.f32.mxu0 0.0
        %1120 = vmatmul.mubr.f32.gmra.mxu0 %v1051
        %v1121 = vpop.f32.mrf.mxu0
        %v1122 = vadd.f32 %v882, %v1121
        %v1123 = vpop.f32.mrf.mxu0
        %1124 = vdwg.mxu0
        %v1125 = vsel %vm962, %v1122, -inf
        %1126 = vmax.xlane.f32.xlu0 %v1125
        %v1127 = vpop.xlane.xlu0 %1126
        %v1128 = vsub.f32 %v1122, %v1127
        %v1129 = vmul.f32 %v1128, 1.442695
        %v1130 = vpow.pop %v1129
        %v1131 = vsel %vm962, %v1130, 0.0
        %1132 = vadd.xlane.f32.xlu0 %v1131
        %v1133 = vpop.xlane.xlu0 %1132
        %v1134 = vrcp.pop %v1133
        %v1135 = vmul.f32 %v1130, %v1134
        %1137 = vrot.lane.b32.xlu0 %v877, 96
        %v1138 = vpop.permute.xlu0 %1137
        %v1141 = vsel %vm962, %v1135, 0
        %1143 = vmatprep.subr.mxu0 0.0
        %1144 = vmatpush1.msra.mxu0 0.0
        %1145 = vmatprep.subr.mxu0 0.0
        %1146 = vmatpush1.msra.mxu0 0.0
        %1147 = vmatprep.subr.mxu0 0.0
        %1148 = vmatpush1.msra.mxu0 0.0
        %1149 = vmatprep.subr.mxu0 0.0
        %1150 = vmatpush1.msra.mxu0 0.0
        %1151 = vmatprep.subr.mxu0 0.0
        %1152 = vmatpush1.msra.mxu0 0.0
        %1153 = vmatprep.subr.mxu0 0.0
        %1154 = vmatpush1.msra.mxu0 0.0
        %1155 = vmatprep.subr.mxu0 0.0
        %1156 = vmatpush1.msra.mxu0 0.0
        %1157 = vmatprep.subr.mxu0 0.0
        %1158 = vmatpush1.msra.mxu0 0.0
        %1159 = vmatprep.subr.mxu0 0.0
        %1160 = vmatpush1.msra.mxu0 0.0
        %1161 = vmatprep.subr.mxu0 0.0
        %1162 = vmatpush1.msra.mxu0 0.0
        %1163 = vmatprep.subr.mxu0 0.0
        %1164 = vmatpush1.msra.mxu0 0.0
        %1165 = vmatprep.subr.mxu0 0.0
        %1166 = vmatpush1.msra.mxu0 0.0
        %1167 = vmatprep.subr.mxu0 0.0
        %1168 = vmatpush1.msra.mxu0 0.0
        %1169 = vmatprep.subr.mxu0 0.0
        %1170 = vmatpush1.msra.mxu0 0.0
        %1171 = vmatprep.subr.mxu0 0.0
        %1172 = vmatpush1.msra.mxu0 0.0
        %1173 = vmatprep.subr.mxu0 0.0
        %1174 = vmatpush1.msra.mxu0 %v1138
        %1175 = vmatprep.subr.mxu0 0.0
        %1176 = vmatpush2.msra.mxu0 0.0
        %1177 = vmatprep.subr.mxu0 0.0
        %1178 = vmatpush2.msra.mxu0 0.0
        %1179 = vmatprep.subr.mxu0 0.0
        %1180 = vmatpush2.msra.mxu0 0.0
        %1181 = vmatprep.subr.mxu0 0.0
        %1182 = vmatpush2.msra.mxu0 0.0
        %1183 = vmatprep.subr.mxu0 0.0
        %1184 = vmatpush2.msra.mxu0 0.0
        %1185 = vmatprep.subr.mxu0 0.0
        %1186 = vmatpush2.msra.mxu0 0.0
        %1187 = vmatprep.subr.mxu0 0.0
        %1188 = vmatpush2.msra.mxu0 0.0
        %1189 = vmatprep.subr.mxu0 0.0
        %1190 = vmatpush2.msra.mxu0 0.0
        %1191 = vmatprep.subr.mxu0 0.0
        %1192 = vmatpush2.msra.mxu0 0.0
        %1193 = vmatprep.subr.mxu0 0.0
        %1194 = vmatpush2.msra.mxu0 0.0
        %1195 = vmatprep.subr.mxu0 0.0
        %1196 = vmatpush2.msra.mxu0 0.0
        %1197 = vmatprep.subr.mxu0 0.0
        %1198 = vmatpush2.msra.mxu0 0.0
        %1199 = vmatprep.subr.mxu0 0.0
        %1200 = vmatpush2.msra.mxu0 0.0
        %1201 = vmatprep.subr.mxu0 0.0
        %1202 = vmatpush2.msra.mxu0 0.0
        %1203 = vmatprep.subr.mxu0 0.0
        %1204 = vmatpush2.msra.mxu0 0.0
        %1205 = vmatprep.subr.mxu0 0.0
        %1206 = vmatpush2.msra.mxu0 0.0
        %1207 = vmatprep.mubr.f32.mxu0 0.0
        %1208 = vmatmul.mubr.f32.gmra.mxu0 %v1141
        %v1209 = vpop.f32.mrf.mxu0
        %v1210 = vadd.f32 0.0, %v1209
        %v1211 = vpop.f32.mrf.mxu0
        %1212 = vdwg.mxu0
        %1213 = vrot.lane.b32.xlu0 %v880, 64
        %v1214 = vpop.permute.xlu0 %1213
        %1215 = vrot.lane.b32.xlu0 %v784, 64
        %v1216 = vpop.permute.xlu0 %1215
        %v1217 = vsel %vm885, %v1214, 0
        %v1219 = vsel %vm885, %v1216, 0
        %1221 = vmatprep.subr.mxu0 0.0
        %1222 = vmatpush1.xpose.msra.mxu0 0.0
        %1223 = vmatprep.subr.mxu0 0.0
        %1224 = vmatpush1.xpose.msra.mxu0 0.0
        %1225 = vmatprep.subr.mxu0 0.0
        %1226 = vmatpush1.xpose.msra.mxu0 0.0
        %1227 = vmatprep.subr.mxu0 0.0
        %1228 = vmatpush1.xpose.msra.mxu0 0.0
        %1229 = vmatprep.subr.mxu0 0.0
        %1230 = vmatpush1.xpose.msra.mxu0 0.0
        %1231 = vmatprep.subr.mxu0 0.0
        %1232 = vmatpush1.xpose.msra.mxu0 0.0
        %1233 = vmatprep.subr.mxu0 0.0
        %1234 = vmatpush1.xpose.msra.mxu0 0.0
        %1235 = vmatprep.subr.mxu0 0.0
        %1236 = vmatpush1.xpose.msra.mxu0 0.0
        %1237 = vmatprep.subr.mxu0 0.0
        %1238 = vmatpush1.xpose.msra.mxu0 0.0
        %1239 = vmatprep.subr.mxu0 0.0
        %1240 = vmatpush1.xpose.msra.mxu0 0.0
        %1241 = vmatprep.subr.mxu0 0.0
        %1242 = vmatpush1.xpose.msra.mxu0 0.0
        %1243 = vmatprep.subr.mxu0 0.0
        %1244 = vmatpush1.xpose.msra.mxu0 0.0
        %1245 = vmatprep.subr.mxu0 0.0
        %1246 = vmatpush1.xpose.msra.mxu0 0.0
        %1247 = vmatprep.subr.mxu0 0.0
        %1248 = vmatpush1.xpose.msra.mxu0 0.0
        %1249 = vmatprep.subr.mxu0 0.0
        %1250 = vmatpush1.xpose.msra.mxu0 0.0
        %1251 = vmatprep.subr.mxu0 0.0
        %1252 = vmatpush1.xpose.msra.mxu0 %v1219
        %1253 = vmatprep.subr.mxu0 0.0
        %1254 = vmatpush2.xpose.msra.mxu0 0.0
        %1255 = vmatprep.subr.mxu0 0.0
        %1256 = vmatpush2.xpose.msra.mxu0 0.0
        %1257 = vmatprep.subr.mxu0 0.0
        %1258 = vmatpush2.xpose.msra.mxu0 0.0
        %1259 = vmatprep.subr.mxu0 0.0
        %1260 = vmatpush2.xpose.msra.mxu0 0.0
        %1261 = vmatprep.subr.mxu0 0.0
        %1262 = vmatpush2.xpose.msra.mxu0 0.0
        %1263 = vmatprep.subr.mxu0 0.0
        %1264 = vmatpush2.xpose.msra.mxu0 0.0
        %1265 = vmatprep.subr.mxu0 0.0
        %1266 = vmatpush2.xpose.msra.mxu0 0.0
        %1267 = vmatprep.subr.mxu0 0.0
        %1268 = vmatpush2.xpose.msra.mxu0 0.0
        %1269 = vmatprep.subr.mxu0 0.0
        %1270 = vmatpush2.xpose.msra.mxu0 0.0
        %1271 = vmatprep.subr.mxu0 0.0
        %1272 = vmatpush2.xpose.msra.mxu0 0.0
        %1273 = vmatprep.subr.mxu0 0.0
        %1274 = vmatpush2.xpose.msra.mxu0 0.0
        %1275 = vmatprep.subr.mxu0 0.0
        %1276 = vmatpush2.xpose.msra.mxu0 0.0
        %1277 = vmatprep.subr.mxu0 0.0
        %1278 = vmatpush2.xpose.msra.mxu0 0.0
        %1279 = vmatprep.subr.mxu0 0.0
        %1280 = vmatpush2.xpose.msra.mxu0 0.0
        %1281 = vmatprep.subr.mxu0 0.0
        %1282 = vmatpush2.xpose.msra.mxu0 0.0
        %1283 = vmatprep.subr.mxu0 0.0
        %1284 = vmatpush2.xpose.msra.mxu0 0.0
        %1285 = vmatprep.mubr.f32.mxu0 0.0
        %1286 = vmatmul.mubr.f32.gmra.mxu0 %v1217
        %v1287 = vpop.f32.mrf.mxu0
        %v1288 = vadd.f32 %v883, %v1287
        %v1289 = vpop.f32.mrf.mxu0
        %1290 = vdwg.mxu0
        %v1291 = vsel %vm962, %v1288, -inf
        %1292 = vmax.xlane.f32.xlu0 %v1291
        %v1293 = vpop.xlane.xlu0 %1292
        %v1294 = vsub.f32 %v1288, %v1293
        %v1295 = vmul.f32 %v1294, 1.442695
        %v1296 = vpow.pop %v1295
        %v1297 = vsel %vm962, %v1296, 0.0
        %1298 = vadd.xlane.f32.xlu0 %v1297
        %v1299 = vpop.xlane.xlu0 %1298
        %v1300 = vrcp.pop %v1299
        %v1301 = vmul.f32 %v1296, %v1300
        %1302 = vrot.lane.b32.xlu0 %v877, 64
        %v1303 = vpop.permute.xlu0 %1302
        %v1306 = vsel %vm962, %v1301, 0
        %1308 = vmatprep.subr.mxu0 0.0
        %1309 = vmatpush1.msra.mxu0 0.0
        %1310 = vmatprep.subr.mxu0 0.0
        %1311 = vmatpush1.msra.mxu0 0.0
        %1312 = vmatprep.subr.mxu0 0.0
        %1313 = vmatpush1.msra.mxu0 0.0
        %1314 = vmatprep.subr.mxu0 0.0
        %1315 = vmatpush1.msra.mxu0 0.0
        %1316 = vmatprep.subr.mxu0 0.0
        %1317 = vmatpush1.msra.mxu0 0.0
        %1318 = vmatprep.subr.mxu0 0.0
        %1319 = vmatpush1.msra.mxu0 0.0
        %1320 = vmatprep.subr.mxu0 0.0
        %1321 = vmatpush1.msra.mxu0 0.0
        %1322 = vmatprep.subr.mxu0 0.0
        %1323 = vmatpush1.msra.mxu0 0.0
        %1324 = vmatprep.subr.mxu0 0.0
        %1325 = vmatpush1.msra.mxu0 0.0
        %1326 = vmatprep.subr.mxu0 0.0
        %1327 = vmatpush1.msra.mxu0 0.0
        %1328 = vmatprep.subr.mxu0 0.0
        %1329 = vmatpush1.msra.mxu0 0.0
        %1330 = vmatprep.subr.mxu0 0.0
        %1331 = vmatpush1.msra.mxu0 0.0
        %1332 = vmatprep.subr.mxu0 0.0
        %1333 = vmatpush1.msra.mxu0 0.0
        %1334 = vmatprep.subr.mxu0 0.0
        %1335 = vmatpush1.msra.mxu0 0.0
        %1336 = vmatprep.subr.mxu0 0.0
        %1337 = vmatpush1.msra.mxu0 0.0
        %1338 = vmatprep.subr.mxu0 0.0
        %1339 = vmatpush1.msra.mxu0 %v1303
        %1340 = vmatprep.subr.mxu0 0.0
        %1341 = vmatpush2.msra.mxu0 0.0
        %1342 = vmatprep.subr.mxu0 0.0
        %1343 = vmatpush2.msra.mxu0 0.0
        %1344 = vmatprep.subr.mxu0 0.0
        %1345 = vmatpush2.msra.mxu0 0.0
        %1346 = vmatprep.subr.mxu0 0.0
        %1347 = vmatpush2.msra.mxu0 0.0
        %1348 = vmatprep.subr.mxu0 0.0
        %1349 = vmatpush2.msra.mxu0 0.0
        %1350 = vmatprep.subr.mxu0 0.0
        %1351 = vmatpush2.msra.mxu0 0.0
        %1352 = vmatprep.subr.mxu0 0.0
        %1353 = vmatpush2.msra.mxu0 0.0
        %1354 = vmatprep.subr.mxu0 0.0
        %1355 = vmatpush2.msra.mxu0 0.0
        %1356 = vmatprep.subr.mxu0 0.0
        %1357 = vmatpush2.msra.mxu0 0.0
        %1358 = vmatprep.subr.mxu0 0.0
        %1359 = vmatpush2.msra.mxu0 0.0
        %1360 = vmatprep.subr.mxu0 0.0
        %1361 = vmatpush2.msra.mxu0 0.0
        %1362 = vmatprep.subr.mxu0 0.0
        %1363 = vmatpush2.msra.mxu0 0.0
        %1364 = vmatprep.subr.mxu0 0.0
        %1365 = vmatpush2.msra.mxu0 0.0
        %1366 = vmatprep.subr.mxu0 0.0
        %1367 = vmatpush2.msra.mxu0 0.0
        %1368 = vmatprep.subr.mxu0 0.0
        %1369 = vmatpush2.msra.mxu0 0.0
        %1370 = vmatprep.subr.mxu0 0.0
        %1371 = vmatpush2.msra.mxu0 0.0
        %1372 = vmatprep.mubr.f32.mxu0 0.0
        %1373 = vmatmul.mubr.f32.gmra.mxu0 %v1306
        %v1374 = vpop.f32.mrf.mxu0
        %v1375 = vadd.f32 0.0, %v1374
        %v1376 = vpop.f32.mrf.mxu0
        %1377 = vdwg.mxu0
        %1378 = vrot.lane.b32.xlu0 %v880, 32
        %v1379 = vpop.permute.xlu0 %1378
        %1380 = vrot.lane.b32.xlu0 %v784, 32
        %v1381 = vpop.permute.xlu0 %1380
        %v1382 = vsel %vm885, %v1379, 0
        %v1384 = vsel %vm885, %v1381, 0
        %1386 = vmatprep.subr.mxu0 0.0
        %1387 = vmatpush1.xpose.msra.mxu0 0.0
        %1388 = vmatprep.subr.mxu0 0.0
        %1389 = vmatpush1.xpose.msra.mxu0 0.0
        %1390 = vmatprep.subr.mxu0 0.0
        %1391 = vmatpush1.xpose.msra.mxu0 0.0
        %1392 = vmatprep.subr.mxu0 0.0
        %1393 = vmatpush1.xpose.msra.mxu0 0.0
        %1394 = vmatprep.subr.mxu0 0.0
        %1395 = vmatpush1.xpose.msra.mxu0 0.0
        %1396 = vmatprep.subr.mxu0 0.0
        %1397 = vmatpush1.xpose.msra.mxu0 0.0
        %1398 = vmatprep.subr.mxu0 0.0
        %1399 = vmatpush1.xpose.msra.mxu0 0.0
        %1400 = vmatprep.subr.mxu0 0.0
        %1401 = vmatpush1.xpose.msra.mxu0 0.0
        %1402 = vmatprep.subr.mxu0 0.0
        %1403 = vmatpush1.xpose.msra.mxu0 0.0
        %1404 = vmatprep.subr.mxu0 0.0
        %1405 = vmatpush1.xpose.msra.mxu0 0.0
        %1406 = vmatprep.subr.mxu0 0.0
        %1407 = vmatpush1.xpose.msra.mxu0 0.0
        %1408 = vmatprep.subr.mxu0 0.0
        %1409 = vmatpush1.xpose.msra.mxu0 0.0
        %1410 = vmatprep.subr.mxu0 0.0
        %1411 = vmatpush1.xpose.msra.mxu0 0.0
        %1412 = vmatprep.subr.mxu0 0.0
        %1413 = vmatpush1.xpose.msra.mxu0 0.0
        %1414 = vmatprep.subr.mxu0 0.0
        %1415 = vmatpush1.xpose.msra.mxu0 0.0
        %1416 = vmatprep.subr.mxu0 0.0
        %1417 = vmatpush1.xpose.msra.mxu0 %v1384
        %1418 = vmatprep.subr.mxu0 0.0
        %1419 = vmatpush2.xpose.msra.mxu0 0.0
        %1420 = vmatprep.subr.mxu0 0.0
        %1421 = vmatpush2.xpose.msra.mxu0 0.0
        %1422 = vmatprep.subr.mxu0 0.0
        %1423 = vmatpush2.xpose.msra.mxu0 0.0
        %1424 = vmatprep.subr.mxu0 0.0
        %1425 = vmatpush2.xpose.msra.mxu0 0.0
        %1426 = vmatprep.subr.mxu0 0.0
        %1427 = vmatpush2.xpose.msra.mxu0 0.0
        %1428 = vmatprep.subr.mxu0 0.0
        %1429 = vmatpush2.xpose.msra.mxu0 0.0
        %1430 = vmatprep.subr.mxu0 0.0
        %1431 = vmatpush2.xpose.msra.mxu0 0.0
        %1432 = vmatprep.subr.mxu0 0.0
        %1433 = vmatpush2.xpose.msra.mxu0 0.0
        %1434 = vmatprep.subr.mxu0 0.0
        %1435 = vmatpush2.xpose.msra.mxu0 0.0
        %1436 = vmatprep.subr.mxu0 0.0
        %1437 = vmatpush2.xpose.msra.mxu0 0.0
        %1438 = vmatprep.subr.mxu0 0.0
        %1439 = vmatpush2.xpose.msra.mxu0 0.0
        %1440 = vmatprep.subr.mxu0 0.0
        %1441 = vmatpush2.xpose.msra.mxu0 0.0
        %1442 = vmatprep.subr.mxu0 0.0
        %1443 = vmatpush2.xpose.msra.mxu0 0.0
        %1444 = vmatprep.subr.mxu0 0.0
        %1445 = vmatpush2.xpose.msra.mxu0 0.0
        %1446 = vmatprep.subr.mxu0 0.0
        %1447 = vmatpush2.xpose.msra.mxu0 0.0
        %1448 = vmatprep.subr.mxu0 0.0
        %1449 = vmatpush2.xpose.msra.mxu0 0.0
        %1450 = vmatprep.mubr.f32.mxu0 0.0
        %1451 = vmatmul.mubr.f32.gmra.mxu0 %v1382
        %v1452 = vpop.f32.mrf.mxu0
        %v1453 = vadd.f32 %v884, %v1452
        %v1454 = vpop.f32.mrf.mxu0
        %1455 = vdwg.mxu0
        %v1456 = vsel %vm962, %v1453, -inf
        %1457 = vmax.xlane.f32.xlu0 %v1456
        %v1458 = vpop.xlane.xlu0 %1457
        %v1459 = vsub.f32 %v1453, %v1458
        %v1460 = vmul.f32 %v1459, 1.442695
        %v1461 = vpow.pop %v1460
        %v1462 = vsel %vm962, %v1461, 0.0
        %1463 = vadd.xlane.f32.xlu0 %v1462
        %v1464 = vpop.xlane.xlu0 %1463
        %v1465 = vrcp.pop %v1464
        %v1466 = vmul.f32 %v1461, %v1465
        %1467 = vrot.lane.b32.xlu0 %v877, 32
        %v1468 = vpop.permute.xlu0 %1467
        %v1471 = vsel %vm962, %v1466, 0
        %1473 = vmatprep.subr.mxu0 0.0
        %1474 = vmatpush1.msra.mxu0 0.0
        %1475 = vmatprep.subr.mxu0 0.0
        %1476 = vmatpush1.msra.mxu0 0.0
        %1477 = vmatprep.subr.mxu0 0.0
        %1478 = vmatpush1.msra.mxu0 0.0
        %1479 = vmatprep.subr.mxu0 0.0
        %1480 = vmatpush1.msra.mxu0 0.0
        %1481 = vmatprep.subr.mxu0 0.0
        %1482 = vmatpush1.msra.mxu0 0.0
        %1483 = vmatprep.subr.mxu0 0.0
        %1484 = vmatpush1.msra.mxu0 0.0
        %1485 = vmatprep.subr.mxu0 0.0
        %1486 = vmatpush1.msra.mxu0 0.0
        %1487 = vmatprep.subr.mxu0 0.0
        %1488 = vmatpush1.msra.mxu0 0.0
        %1489 = vmatprep.subr.mxu0 0.0
        %1490 = vmatpush1.msra.mxu0 0.0
        %1491 = vmatprep.subr.mxu0 0.0
        %1492 = vmatpush1.msra.mxu0 0.0
        %1493 = vmatprep.subr.mxu0 0.0
        %1494 = vmatpush1.msra.mxu0 0.0
        %1495 = vmatprep.subr.mxu0 0.0
        %1496 = vmatpush1.msra.mxu0 0.0
        %1497 = vmatprep.subr.mxu0 0.0
        %1498 = vmatpush1.msra.mxu0 0.0
        %1499 = vmatprep.subr.mxu0 0.0
        %1500 = vmatpush1.msra.mxu0 0.0
        %1501 = vmatprep.subr.mxu0 0.0
        %1502 = vmatpush1.msra.mxu0 0.0
        %1503 = vmatprep.subr.mxu0 0.0
        %1504 = vmatpush1.msra.mxu0 %v1468
        %1505 = vmatprep.subr.mxu0 0.0
        %1506 = vmatpush2.msra.mxu0 0.0
        %1507 = vmatprep.subr.mxu0 0.0
        %1508 = vmatpush2.msra.mxu0 0.0
        %1509 = vmatprep.subr.mxu0 0.0
        %1510 = vmatpush2.msra.mxu0 0.0
        %1511 = vmatprep.subr.mxu0 0.0
        %1512 = vmatpush2.msra.mxu0 0.0
        %1513 = vmatprep.subr.mxu0 0.0
        %1514 = vmatpush2.msra.mxu0 0.0
        %1515 = vmatprep.subr.mxu0 0.0
        %1516 = vmatpush2.msra.mxu0 0.0
        %1517 = vmatprep.subr.mxu0 0.0
        %1518 = vmatpush2.msra.mxu0 0.0
        %1519 = vmatprep.subr.mxu0 0.0
        %1520 = vmatpush2.msra.mxu0 0.0
        %1521 = vmatprep.subr.mxu0 0.0
        %1522 = vmatpush2.msra.mxu0 0.0
        %1523 = vmatprep.subr.mxu0 0.0
        %1524 = vmatpush2.msra.mxu0 0.0
        %1525 = vmatprep.subr.mxu0 0.0
        %1526 = vmatpush2.msra.mxu0 0.0
        %1527 = vmatprep.subr.mxu0 0.0
        %1528 = vmatpush2.msra.mxu0 0.0
        %1529 = vmatprep.subr.mxu0 0.0
        %1530 = vmatpush2.msra.mxu0 0.0
        %1531 = vmatprep.subr.mxu0 0.0
        %1532 = vmatpush2.msra.mxu0 0.0
        %1533 = vmatprep.subr.mxu0 0.0
        %1534 = vmatpush2.msra.mxu0 0.0
        %1535 = vmatprep.subr.mxu0 0.0
        %1536 = vmatpush2.msra.mxu0 0.0
        %1537 = vmatprep.mubr.f32.mxu0 0.0
        %1538 = vmatmul.mubr.f32.gmra.mxu0 %v1471
        %v1539 = vpop.f32.mrf.mxu0
        %v1540 = vadd.f32 0.0, %v1539
        %v1541 = vpop.f32.mrf.mxu0
        %1542 = vdwg.mxu0
        %1544 = vrot.lane.b32.xlu0 %v1210, 32
        %v1545 = vpop.permute.xlu0 %1544
        %1548 = vrot.lane.b32.xlu0 %v1375, 64
        %v1549 = vpop.permute.xlu0 %1548
        %1552 = vrot.lane.b32.xlu0 %v1540, 96
        %v1553 = vpop.permute.xlu0 %1552
        %v1555 = vsel %vm885, %v1044, %v1545
        %vm1556 = vcmask 523264
        %v1557 = vsel %vm1556, %v1555, %v1549
        %vm1558 = vcmask 785408
        %v1559 = vsel %vm1558, %v1557, %v1553
        %v1560 = vld [vmem:[#allocation13] sm:$0xff]
        %v1561 = vld [vmem:[#allocation13 + $0x8] sm:$0xff]
        %v1562 = vld [vmem:[#allocation13 + $0x10] sm:$0xff]
        %v1563 = vld [vmem:[#allocation13 + $0x18] sm:$0xff]
        %v1564 = vld [vmem:[#allocation13 + $0x20] sm:$0xff]
        %v1565 = vld [vmem:[#allocation13 + $0x28] sm:$0xff]
        %v1566 = vld [vmem:[#allocation13 + $0x30] sm:$0xff]
        %v1567 = vld [vmem:[#allocation13 + $0x38] sm:$0xff]
        %v1568 = vld [vmem:[#allocation13 + $0x40] sm:$0xff]
        %v1569 = vld [vmem:[#allocation13 + $0x48] sm:$0xff]
        %v1570 = vld [vmem:[#allocation13 + $0x50] sm:$0xff]
        %v1571 = vld [vmem:[#allocation13 + $0x58] sm:$0xff]
        %v1572 = vld [vmem:[#allocation13 + $0x60] sm:$0xff]
        %v1573 = vld [vmem:[#allocation13 + $0x68] sm:$0xff]
        %v1574 = vld [vmem:[#allocation13 + $0x70] sm:$0xff]
        %v1575 = vld [vmem:[#allocation13 + $0x78] sm:$0xff]
        %v1576 = vld [vmem:[%s10] sm:$0x1]
        %v1578 = vlaneseq
        %v1579 = vshrl.u32 %v1578, 7
        %v1580 = vsub.s32 0, %v1579
        %v1581 = vrot.slane %v1576, %v1580
        %1583 = vmatprep.subr.mxu0 0.0
        %1584 = vmatpush1.msra.mxu0 %v1575
        %1585 = vmatprep.subr.mxu0 0.0
        %1586 = vmatpush1.msra.mxu0 %v1574
        %1587 = vmatprep.subr.mxu0 0.0
        %1588 = vmatpush1.msra.mxu0 %v1573
        %1589 = vmatprep.subr.mxu0 0.0
        %1590 = vmatpush1.msra.mxu0 %v1572
        %1591 = vmatprep.subr.mxu0 0.0
        %1592 = vmatpush1.msra.mxu0 %v1571
        %1593 = vmatprep.subr.mxu0 0.0
        %1594 = vmatpush1.msra.mxu0 %v1570
        %1595 = vmatprep.subr.mxu0 0.0
        %1596 = vmatpush1.msra.mxu0 %v1569
        %1597 = vmatprep.subr.mxu0 0.0
        %1598 = vmatpush1.msra.mxu0 %v1568
        %1599 = vmatprep.subr.mxu0 0.0
        %1600 = vmatpush1.msra.mxu0 %v1567
        %1601 = vmatprep.subr.mxu0 0.0
        %1602 = vmatpush1.msra.mxu0 %v1566
        %1603 = vmatprep.subr.mxu0 0.0
        %1604 = vmatpush1.msra.mxu0 %v1565
        %1605 = vmatprep.subr.mxu0 0.0
        %1606 = vmatpush1.msra.mxu0 %v1564
        %1607 = vmatprep.subr.mxu0 0.0
        %1608 = vmatpush1.msra.mxu0 %v1563
        %1609 = vmatprep.subr.mxu0 0.0
        %1610 = vmatpush1.msra.mxu0 %v1562
        %1611 = vmatprep.subr.mxu0 0.0
        %1612 = vmatpush1.msra.mxu0 %v1561
        %1613 = vmatprep.subr.mxu0 0.0
        %1614 = vmatpush1.msra.mxu0 %v1560
        %1615 = vmatprep.subr.mxu0 0.0
        %1616 = vmatpush2.msra.mxu0 0.0
        %1617 = vmatprep.subr.mxu0 0.0
        %1618 = vmatpush2.msra.mxu0 0.0
        %1619 = vmatprep.subr.mxu0 0.0
        %1620 = vmatpush2.msra.mxu0 0.0
        %1621 = vmatprep.subr.mxu0 0.0
        %1622 = vmatpush2.msra.mxu0 0.0
        %1623 = vmatprep.subr.mxu0 0.0
        %1624 = vmatpush2.msra.mxu0 0.0
        %1625 = vmatprep.subr.mxu0 0.0
        %1626 = vmatpush2.msra.mxu0 0.0
        %1627 = vmatprep.subr.mxu0 0.0
        %1628 = vmatpush2.msra.mxu0 0.0
        %1629 = vmatprep.subr.mxu0 0.0
        %1630 = vmatpush2.msra.mxu0 0.0
        %1631 = vmatprep.subr.mxu0 0.0
        %1632 = vmatpush2.msra.mxu0 0.0
        %1633 = vmatprep.subr.mxu0 0.0
        %1634 = vmatpush2.msra.mxu0 0.0
        %1635 = vmatprep.subr.mxu0 0.0
        %1636 = vmatpush2.msra.mxu0 0.0
        %1637 = vmatprep.subr.mxu0 0.0
        %1638 = vmatpush2.msra.mxu0 0.0
        %1639 = vmatprep.subr.mxu0 0.0
        %1640 = vmatpush2.msra.mxu0 0.0
        %1641 = vmatprep.subr.mxu0 0.0
        %1642 = vmatpush2.msra.mxu0 0.0
        %1643 = vmatprep.subr.mxu0 0.0
        %1644 = vmatpush2.msra.mxu0 0.0
        %1645 = vmatprep.subr.mxu0 0.0
        %1646 = vmatpush2.msra.mxu0 0.0
        %1647 = vmatprep.mubr.f32.mxu0 0.0
        %1648 = vmatmul.mubr.f32.gmra.mxu0 %v1559
        %v1649 = vpop.f32.mrf.mxu0
        %v1650 = vadd.f32 %v1581, %v1649
        %v1651 = vpop.f32.mrf.mxu0
        %1652 = vdwg.mxu0
        %1653 = vst [vmem:[%s597] sm:$0xff] %v1650
        %s1654 = sand.u32 %s317, 1
        %s1655 = scalar_lea.sflag [#allocation4], %s1654
        %s1656 = sand.u32 %s317, 1
        %s1657 = smul.addr %s1656, 8
        %s1658 = scalar_lea.vmem [#allocation16], %s1657
        // Predicated region
        $region101: #{tpu_custom_call.1} parent=67 // pred_check
          %p1659 = pneg %p327
        $region102: #{tpu_custom_call.1} parent=67 // pred_check_branch
          %1661 = sbr.rel (%p1659) target = $region104
        $region103: #{tpu_custom_call.1} parent=67 // pred_region
          %s1663 = ssub.s32 128, 128
          %1664 = vsyncadd %s1655, %s1663
          %s1665 = smul.addr %s37, 128
          %s1666 = scalar_lea.hbm %s12, %s1665
          %s1668 = sshll.u32 %s1658, 4
          %s1669 = int_to_ptr.vmem [resolvable:$true] %s1668
          %1671 = dma.vmem_to_hbm [thread:$0]  %s1669, 128, %s1666, %s1655
        $region104: #{tpu_custom_call.1} parent=67 // pred_fallthru
          _
      $region68: #{tpu_custom_call.1} parent=5 // pred_fallthru
        _
      %p1672 = scmp.le.s32.totalorder 2, %s32
      // Predicated region
      $region105: #{tpu_custom_call.1} parent=5 // pred_check
        %p1673 = pneg %p1672
      $region106: #{tpu_custom_call.1} parent=5 // pred_check_branch
        %1675 = sbr.rel (%p1673) target = $region108
      $region107: #{tpu_custom_call.1} parent=5 // pred_region
        %s1676 = ssub.s32 %s32, 2
        // Predicated region
        $region109: #{tpu_custom_call.1} parent=107 // pred_check
          %p1677 = pneg %p333
        $region110: #{tpu_custom_call.1} parent=107 // pred_check_branch
          %1679 = sbr.rel (%p1677) target = $region112
        $region111: #{tpu_custom_call.1} parent=107 // pred_region
          %s1680 = sand.u32 %s318, 1
          %s1681 = scalar_lea.sflag [#allocation4], %s1680
          %s1682 = sand.u32 %s318, 1
          %s1683 = smul.addr %s1682, 8
          %s1684 = scalar_lea.vmem [#allocation16], %s1683
          %1685 = dma.done %s1681, 128
        $region112: #{tpu_custom_call.1} parent=107 // pred_fallthru
          _
      $region108: #{tpu_custom_call.1} parent=5 // pred_fallthru
        _
    $region6: #{tpu_custom_call.1} parent=1 // loop_footer
      %s36 = sadd.s32 1, %s32
    $region7: #{tpu_custom_call.1} parent=1 // loop_footer_branch
      %31 = sbr.rel target = $region3
    $region8: #{tpu_custom_call.1} parent=1 // loop_exit
      _
    %1686 = vsyncpa [#allocation3], 1
    %s1687 = scalar_lea.sflag [#allocation3], 1
    %1688 = vsyncpa %s1687, 1
    %1689 = vsyncpa [#allocation6], 1
    %s1690 = scalar_lea.sflag [#allocation6], 1
    %1691 = vsyncpa %s1690, 1
    %1692 = vsyncpa [#allocation9], 1
    %1693 = vsyncpa [#allocation12], 1
    %1694 = vsyncpa [#allocation15], 1
    %s1695 = scalar_lea.sflag [#allocation15], 1
    %1696 = vsyncpa %s1695, 1
    %1697 = vsyncpa [#allocation4], 1
    %s1698 = scalar_lea.sflag [#allocation4], 1
    %1699 = vsyncpa %s1698, 1

</llo_original>
